<compile_context>
chip_gen: v7x
topology: tpu7x:2x2x1
jax: 0.10.0
libtpu: 0.0.40
codegen_flags: <defaults>
</compile_context>

<pallas_src>
import jax
import jax.numpy as jnp
from jax.experimental import pallas as pl
from jax.experimental.pallas import tpu as pltpu

_LN_EPS = 1e-5


# ---------------------------------------------------------------------------
# Shared math helpers (used identically inside kernels and in the JAX reference)
# ---------------------------------------------------------------------------

def _erf(x):
    # Abramowitz & Stegun 7.1.26 polynomial, |abs err| < 1.5e-7.
    # (Avoids relying on an erf primitive lowering inside Mosaic.)
    a1, a2, a3, a4, a5 = (0.254829592, -0.284496736, 1.421413741,
                          -1.453152027, 1.061405429)
    p = 0.3275911
    s = jnp.where(x >= 0.0, 1.0, -1.0)
    ax = jnp.abs(x)
    t = 1.0 / (1.0 + p * ax)
    poly = ((((a5 * t + a4) * t + a3) * t + a2) * t + a1) * t
    return s * (1.0 - poly * jnp.exp(-ax * ax))


def _gelu_exact(x):
    # Matches PyTorch nn.GELU() default (exact erf form) to ~1e-7.
    return 0.5 * x * (1.0 + _erf(x * 0.7071067811865476))


def _layernorm(x, gamma, beta, eps=_LN_EPS):
    mean = jnp.mean(x, axis=-1, keepdims=True)
    var = jnp.mean((x - mean) ** 2, axis=-1, keepdims=True)
    return (x - mean) * jax.lax.rsqrt(var + eps) * gamma + beta


def _pick_tile(dim, target, align):
    """Largest multiple of `align` that divides `dim` and is <= target (or dim)."""
    if dim <= target:
        return dim
    t = (target // align) * align
    while t >= align:
        if dim % t == 0:
            return t
        t -= align
    return dim


# ---------------------------------------------------------------------------
# Backbone: fused n_layer pre-LN residual MLP blocks
# grid = (token_tiles, n_layer, ff_chunks)   (parallel, arbitrary, arbitrary)
# ---------------------------------------------------------------------------

def backbone_kernel(x_ref, ln_g_ref, ln_b_ref, w1_ref, b1_ref, w2_ref, b2_ref,
                    out_ref, x_res, x_ln, acc):
    l = pl.program_id(1)
    c = pl.program_id(2)
    last_l = pl.num_programs(1) - 1
    last_c = pl.num_programs(2) - 1

    # Load the activation tile into resident f32 scratch once per token tile.
    @pl.when(jnp.logical_and(l == 0, c == 0))
    def _():
        x_res[...] = x_ref[...].astype(jnp.float32)

    # Per layer: LayerNorm once (f32 math), cache bf16 LN output, zero accumulator.
    @pl.when(c == 0)
    def _():
        x = x_res[...]
        g = ln_g_ref[0].astype(jnp.float32)      # (1, H)
        b = ln_b_ref[0].astype(jnp.float32)      # (1, H)
        x_ln[...] = _layernorm(x, g, b).astype(x_ln.dtype)
        acc[...] = jnp.zeros_like(acc)

    # Stream one 4H-chunk: h = GELU(x_ln @ W1_chunk + b1_chunk);  acc += h @ W2_chunk
    h = jnp.dot(x_ln[...], w1_ref[0], preferred_element_type=jnp.float32)
    h = h + b1_ref[0].astype(jnp.float32)
    h = _gelu_exact(h)
    acc[...] += jnp.dot(h.astype(w2_ref.dtype), w2_ref[0],
                        preferred_element_type=jnp.float32)

    # Close the layer: residual add (bias b2 added once), keep f32 resident.
    @pl.when(c == last_c)
    def _():
        x_res[...] = x_res[...] + acc[...] + b2_ref[0].astype(jnp.float32)

    # After the last layer, emit the token tile.
    @pl.when(jnp.logical_and(l == last_l, c == last_c))
    def _():
        out_ref[...] = x_res[...].astype(out_ref.dtype)


def backbone_forward(x, params, *, tm_target=256, tc_target=256):
    T, H = x.shape
    L, _, FF = params["w1"].shape
    tm = _pick_tile(T, tm_target, 8)
    tc = _pick_tile(FF, tc_target, 128)
    grid = (T // tm, L, FF // tc)

    return pl.pallas_call(
        backbone_kernel,
        out_shape=jax.ShapeDtypeStruct((T, H), x.dtype),
        grid_spec=pltpu.PrefetchScalarGridSpec(
            num_scalar_prefetch=0,
            grid=grid,
            in_specs=[
                pl.BlockSpec((tm, H), lambda i, l, c: (i, 0)),       # x
                pl.BlockSpec((1, 1, H), lambda i, l, c: (l, 0, 0)),  # ln gamma
                pl.BlockSpec((1, 1, H), lambda i, l, c: (l, 0, 0)),  # ln beta
                pl.BlockSpec((1, H, tc), lambda i, l, c: (l, 0, c)), # W1 chunk
                pl.BlockSpec((1, 1, tc), lambda i, l, c: (l, 0, c)), # b1 chunk
                pl.BlockSpec((1, tc, H), lambda i, l, c: (l, c, 0)), # W2 chunk
                pl.BlockSpec((1, 1, H), lambda i, l, c: (l, 0, 0)),  # b2
            ],
            out_specs=pl.BlockSpec((tm, H), lambda i, l, c: (i, 0)),
            scratch_shapes=[
                pltpu.VMEM((tm, H), jnp.float32),   # resident activations
                pltpu.VMEM((tm, H), jnp.bfloat16),  # cached LN(x)
                pltpu.VMEM((tm, H), jnp.float32),   # second-matmul accumulator
            ],
        ),
        compiler_params=pltpu.CompilerParams(
            dimension_semantics=("parallel", "arbitrary", "arbitrary"),
            vmem_limit_bytes=48 * 1024 * 1024,
        ),
    )(x, params["ln_g"], params["ln_b"], params["w1"], params["b1"],
      params["w2"], params["b2"])


# ---------------------------------------------------------------------------
# Decoder: final LayerNorm + LM head, tiled over (token_tiles, vocab_tiles)
# ---------------------------------------------------------------------------

def decoder_kernel(x_ref, g_ref, b_ref, w_ref, hb_ref, out_ref, x_ln):
    j = pl.program_id(1)

    # Compute LN(x) once per token tile, reuse across all vocab tiles.
    @pl.when(j == 0)
    def _():
        x = x_ref[...].astype(jnp.float32)
        g = g_ref[...].astype(jnp.float32)
        b = b_ref[...].astype(jnp.float32)
        x_ln[...] = _layernorm(x, g, b).astype(x_ln.dtype)

    logits = jnp.dot(x_ln[...], w_ref[...], preferred_element_type=jnp.float32)
    out_ref[...] = (logits + hb_ref[...].astype(jnp.float32)).astype(out_ref.dtype)


def decoder_forward(x, params, *, tm_target=256, tv_target=256):
    T, H = x.shape
    V = params["head_w"].shape[1]
    tm = _pick_tile(T, tm_target, 8)
    tv = _pick_tile(V, tv_target, 128)
    grid = (T // tm, V // tv)

    return pl.pallas_call(
        decoder_kernel,
        out_shape=jax.ShapeDtypeStruct((T, V), jnp.float32),
        grid_spec=pltpu.PrefetchScalarGridSpec(
            num_scalar_prefetch=0,
            grid=grid,
            in_specs=[
                pl.BlockSpec((tm, H), lambda i, j: (i, 0)),   # hidden states
                pl.BlockSpec((1, H), lambda i, j: (0, 0)),    # ln_f gamma
                pl.BlockSpec((1, H), lambda i, j: (0, 0)),    # ln_f beta
                pl.BlockSpec((H, tv), lambda i, j: (0, j)),   # head weight tile
                pl.BlockSpec((1, tv), lambda i, j: (0, j)),   # head bias tile
            ],
            out_specs=pl.BlockSpec((tm, tv), lambda i, j: (i, j)),
            scratch_shapes=[pltpu.VMEM((tm, H), jnp.bfloat16)],  # cached LN(x)
        ),
        compiler_params=pltpu.CompilerParams(
            dimension_semantics=("parallel", "arbitrary"),
            vmem_limit_bytes=48 * 1024 * 1024,
        ),
    )(x, params["ln_f_g"], params["ln_f_b"], params["head_w"], params["head_b"])


# ---------------------------------------------------------------------------
# Parameters + forward
# ---------------------------------------------------------------------------

def init_params(key, vocab, hidden, n_layer, w_dtype=jnp.bfloat16):
    """GPT-style init (~ _init_weights: N(0, 0.02), residual-scaled), stacked per layer."""
    ff = 4 * hidden
    k_emb, k_w1, k_w2, k_head = jax.random.split(key, 4)
    resid_scale = 1.0 / jnp.sqrt(2.0 * n_layer)
    return {
        "embed": 0.02 * jax.random.normal(k_emb, (vocab, hidden), jnp.float32),
        "ln_g": jnp.ones((n_layer, 1, hidden), jnp.float32),
        "ln_b": jnp.zeros((n_layer, 1, hidden), jnp.float32),
        "w1": (0.02 * jax.random.normal(k_w1, (n_layer, hidden, ff),
                                        jnp.float32)).astype(w_dtype),
        "b1": jnp.zeros((n_layer, 1, ff), jnp.float32),
        "w2": (0.02 * resid_scale
               * jax.random.normal(k_w2, (n_layer, ff, hidden),
                                   jnp.float32)).astype(w_dtype),
        "b2": jnp.zeros((n_layer, 1, hidden), jnp.float32),
        "ln_f_g": jnp.ones((1, hidden), jnp.float32),
        "ln_f_b": jnp.zeros((1, hidden), jnp.float32),
        "head_w": (0.02 * jax.random.normal(k_head, (hidden, vocab),
                                            jnp.float32)).astype(w_dtype),
        "head_b": jnp.zeros((1, vocab), jnp.float32),
    }


@jax.jit
def forward(params, token_ids):
    B, S = token_ids.shape
    V = params["head_w"].shape[1]

    # embeddings(inputs): data-dependent gather stays as JAX glue.
    # TODO(synk): an in-kernel DMA-gather embedding lookup is possible but not needed here.
    x = jnp.take(params["embed"], token_ids.reshape(-1), axis=0).astype(jnp.bfloat16)

    # backbone: fused residual MLP stack (Pallas).
    x = backbone_forward(x, params)

    # decoder: final LN + LM head (Pallas).
    logits = decoder_forward(x, params)
    return logits.reshape(B, S, V)


# ---------------------------------------------------------------------------
# Pure-JAX reference (mirrors kernel numerics: bf16 matmul operands, f32 math)
# ---------------------------------------------------------------------------

def reference_forward(params, token_ids):
    B, S = token_ids.shape
    V = params["head_w"].shape[1]
    L = params["w1"].shape[0]
    hp = jax.lax.Precision.HIGHEST

    x = jnp.take(params["embed"], token_ids.reshape(-1), axis=0)
    x = x.astype(jnp.bfloat16).astype(jnp.float32)
    for l in range(L):
        xn = _layernorm(x, params["ln_g"][l, 0], params["ln_b"][l, 0])
        xn = xn.astype(jnp.bfloat16).astype(jnp.float32)
        h = jnp.dot(xn, params["w1"][l].astype(jnp.float32), precision=hp)
        h = _gelu_exact(h + params["b1"][l, 0])
        h = h.astype(jnp.bfloat16).astype(jnp.float32)
        x = x + jnp.dot(h, params["w2"][l].astype(jnp.float32), precision=hp)
        x = x + params["b2"][l, 0]
    x = x.astype(jnp.bfloat16).astype(jnp.float32)
    xn = _layernorm(x, params["ln_f_g"][0], params["ln_f_b"][0])
    xn = xn.astype(jnp.bfloat16).astype(jnp.float32)
    logits = jnp.dot(xn, params["head_w"].astype(jnp.float32), precision=hp)
    logits = logits + params["head_b"][0]
    return logits.reshape(B, S, V)


if __name__ == "__main__":
    key = jax.random.PRNGKey(0)
    # Small, lane-aligned shapes (H, 4H, V multiples of 128).
    batch, seq, hidden, vocab, n_layer = 2, 8, 128, 512, 2

    p_key, x_key = jax.random.split(key)
    params = init_params(p_key, vocab, hidden, n_layer)
    token_ids = jax.random.randint(x_key, (batch, seq), 0, vocab, dtype=jnp.int32)

    out = forward(params, token_ids)
    jax.block_until_ready(out)
    assert out.shape == (batch, seq, vocab), out.shape
    assert bool(jnp.all(jnp.isfinite(out)))

    ref = reference_forward(params, token_ids)
    max_err = float(jnp.max(jnp.abs(out - ref)))
    assert max_err < 5e-2, f"max abs err vs reference: {max_err}"
    print("KERNEL_OK")
</pallas_src>

<mosaic_0001>
module attributes {stable_mosaic.version = 11 : i64} {
  func.func @backbone_kernel(%arg0: i32, %arg1: i32, %arg2: i32, %arg3: memref<16x128xbf16, #tpu.memory_space<vmem>>, %arg4: memref<1x1x128xf32, #tpu.memory_space<vmem>>, %arg5: memref<1x1x128xf32, #tpu.memory_space<vmem>>, %arg6: memref<1x128x256xbf16, #tpu.memory_space<vmem>>, %arg7: memref<1x1x256xf32, #tpu.memory_space<vmem>>, %arg8: memref<1x256x128xbf16, #tpu.memory_space<vmem>>, %arg9: memref<1x1x128xf32, #tpu.memory_space<vmem>>, %arg10: memref<16x128xbf16, #tpu.memory_space<vmem>>, %arg11: memref<16x128xf32, #tpu.memory_space<vmem>>, %arg12: memref<16x128xbf16, #tpu.memory_space<vmem>>, %arg13: memref<16x128xf32, #tpu.memory_space<vmem>>) attributes {dimension_semantics = [#tpu.dimension_semantics<parallel>, #tpu.dimension_semantics<arbitrary>, #tpu.dimension_semantics<arbitrary>], iteration_bounds = array<i64: 1, 2, 2>, scalar_prefetch = 0 : i64, scratch_operands = 3 : i64, tpu.core_type = #tpu.core_type<tc>, window_params = [{transform_indices = @transform_0, window_bounds = array<i64: 16, 128>}, {transform_indices = @transform_1, window_bounds = array<i64: 1, 1, 128>}, {transform_indices = @transform_2, window_bounds = array<i64: 1, 1, 128>}, {transform_indices = @transform_3, window_bounds = array<i64: 1, 128, 256>}, {transform_indices = @transform_4, window_bounds = array<i64: 1, 1, 256>}, {transform_indices = @transform_5, window_bounds = array<i64: 1, 256, 128>}, {transform_indices = @transform_6, window_bounds = array<i64: 1, 1, 128>}, {transform_indices = @transform_7, window_bounds = array<i64: 16, 128>}]} {
    %c0_i32 = arith.constant 0 : i32
    %0 = arith.cmpi eq, %arg1, %c0_i32 : i32
    %c0_i32_0 = arith.constant 0 : i32
    %1 = arith.cmpi eq, %arg2, %c0_i32_0 : i32
    %2 = arith.andi %0, %1 : i1
    %3 = arith.extui %2 : i1 to i32
    %c0_i32_1 = arith.constant 0 : i32
    %4 = arith.cmpi ne, %3, %c0_i32_1 : i32
    scf.if %4 {
      %c0_39 = arith.constant 0 : index
      %c0_40 = arith.constant 0 : index
      %72 = vector.load %arg3[%c0_39, %c0_40] : memref<16x128xbf16, #tpu.memory_space<vmem>>, vector<16x128xbf16>
      %73 = arith.extf %72 : vector<16x128xbf16> to vector<16x128xf32>
      %c0_41 = arith.constant 0 : index
      %c0_42 = arith.constant 0 : index
      %74 = vector.load %arg11[%c0_41, %c0_42] : memref<16x128xf32, #tpu.memory_space<vmem>>, vector<16x128xf32>
      tpu.vector_store %arg11[%c0_41, %c0_42], %73 {strides = array<i32>} : memref<16x128xf32, #tpu.memory_space<vmem>>, vector<16x128xf32>,
    } else {
    }
    %c0_i32_2 = arith.constant 0 : i32
    %5 = arith.cmpi eq, %arg2, %c0_i32_2 : i32
    %6 = arith.extui %5 : i1 to i32
    %c0_i32_3 = arith.constant 0 : i32
    %7 = arith.cmpi ne, %6, %c0_i32_3 : i32
    scf.if %7 {
      %c0_39 = arith.constant 0 : index
      %c0_40 = arith.constant 0 : index
      %72 = vector.load %arg11[%c0_39, %c0_40] : memref<16x128xf32, #tpu.memory_space<vmem>>, vector<16x128xf32>
      %c0_41 = arith.constant 0 : index
      %c0_42 = arith.constant 0 : index
      %c0_43 = arith.constant 0 : index
      %73 = vector.load %arg4[%c0_41, %c0_42, %c0_43] : memref<1x1x128xf32, #tpu.memory_space<vmem>>, vector<1x1x128xf32>
      %74 = vector.shape_cast %73 : vector<1x1x128xf32> to vector<1x128xf32>
      %c0_44 = arith.constant 0 : index
      %c0_45 = arith.constant 0 : index
      %c0_46 = arith.constant 0 : index
      %75 = vector.load %arg5[%c0_44, %c0_45, %c0_46] : memref<1x1x128xf32, #tpu.memory_space<vmem>>, vector<1x1x128xf32>
      %76 = vector.shape_cast %75 : vector<1x1x128xf32> to vector<1x128xf32>
      %cst_47 = arith.constant dense<0.000000e+00> : vector<16xf32>
      %77 = vector.multi_reduction <add>, %72, %cst_47 [1] : vector<16x128xf32> to vector<16xf32>
      %78 = vector.shape_cast %77 : vector<16xf32> to vector<16x1xf32>
      %cst_48 = arith.constant 1.280000e+02 : f32
      %79 = vector.broadcast %cst_48 : f32 to vector<16x1xf32>
      %80 = arith.divf %78, %79 : vector<16x1xf32>
      %81 = vector.broadcast %80 : vector<16x1xf32> to vector<16x128xf32>
      %82 = arith.subf %72, %81 : vector<16x128xf32>
      %83 = arith.mulf %82, %82 : vector<16x128xf32>
      %cst_49 = arith.constant dense<0.000000e+00> : vector<16xf32>
      %84 = vector.multi_reduction <add>, %83, %cst_49 [1] : vector<16x128xf32> to vector<16xf32>
      %85 = vector.shape_cast %84 : vector<16xf32> to vector<16x1xf32>
      %cst_50 = arith.constant 1.280000e+02 : f32
      %86 = vector.broadcast %cst_50 : f32 to vector<16x1xf32>
      %87 = arith.divf %85, %86 : vector<16x1xf32>
      %88 = vector.broadcast %80 : vector<16x1xf32> to vector<16x128xf32>
      %89 = arith.subf %72, %88 : vector<16x128xf32>
      %cst_51 = arith.constant 9.99999974E-6 : f32
      %90 = vector.broadcast %cst_51 : f32 to vector<16x1xf32>
      %91 = arith.addf %87, %90 : vector<16x1xf32>
      %92 = math.rsqrt %91 : vector<16x1xf32>
      %93 = vector.broadcast %92 : vector<16x1xf32> to vector<16x128xf32>
      %94 = arith.mulf %89, %93 : vector<16x128xf32>
      %95 = vector.broadcast %74 : vector<1x128xf32> to vector<16x128xf32>
      %96 = arith.mulf %94, %95 : vector<16x128xf32>
      %97 = vector.broadcast %76 : vector<1x128xf32> to vector<16x128xf32>
      %98 = arith.addf %96, %97 : vector<16x128xf32>
      %99 = arith.truncf %98 : vector<16x128xf32> to vector<16x128xbf16>
      %c0_52 = arith.constant 0 : index
      %c0_53 = arith.constant 0 : index
      %100 = vector.load %arg12[%c0_52, %c0_53] : memref<16x128xbf16, #tpu.memory_space<vmem>>, vector<16x128xbf16>
      tpu.vector_store %arg12[%c0_52, %c0_53], %99 {strides = array<i32>} : memref<16x128xbf16, #tpu.memory_space<vmem>>, vector<16x128xbf16>,
      %cst_54 = arith.constant 0.000000e+00 : f32
      %101 = vector.broadcast %cst_54 : f32 to vector<16x128xf32>
      %c0_55 = arith.constant 0 : index
      %c0_56 = arith.constant 0 : index
      %102 = vector.load %arg13[%c0_55, %c0_56] : memref<16x128xf32, #tpu.memory_space<vmem>>, vector<16x128xf32>
      tpu.vector_store %arg13[%c0_55, %c0_56], %101 {strides = array<i32>} : memref<16x128xf32, #tpu.memory_space<vmem>>, vector<16x128xf32>,
    } else {
    }
    %c0 = arith.constant 0 : index
    %c0_4 = arith.constant 0 : index
    %8 = vector.load %arg12[%c0, %c0_4] : memref<16x128xbf16, #tpu.memory_space<vmem>>, vector<16x128xbf16>
    %c0_5 = arith.constant 0 : index
    %c0_6 = arith.constant 0 : index
    %c0_7 = arith.constant 0 : index
    %9 = vector.load %arg6[%c0_5, %c0_6, %c0_7] : memref<1x128x256xbf16, #tpu.memory_space<vmem>>, vector<1x128x256xbf16>
    %10 = vector.shape_cast %9 : vector<1x128x256xbf16> to vector<128x256xbf16>
    %cst = arith.constant dense<0.000000e+00> : vector<16x256xf32>
    %11 = tpu.matmul %8, %10, %cst {dimension_numbers = #tpu.dot_dimension_numbers<[1], [0], [0], [1], [0, 0, 1, 1], [], []>} : vector<16x128xbf16>, vector<128x256xbf16>, vector<16x256xf32> -> vector<16x256xf32>
    %c0_8 = arith.constant 0 : index
    %c0_9 = arith.constant 0 : index
    %c0_10 = arith.constant 0 : index
    %12 = vector.load %arg7[%c0_8, %c0_9, %c0_10] : memref<1x1x256xf32, #tpu.memory_space<vmem>>, vector<1x1x256xf32>
    %13 = vector.shape_cast %12 : vector<1x1x256xf32> to vector<1x256xf32>
    %14 = vector.broadcast %13 : vector<1x256xf32> to vector<16x256xf32>
    %15 = arith.addf %11, %14 : vector<16x256xf32>
    %cst_11 = arith.constant 5.000000e-01 : f32
    %16 = vector.broadcast %cst_11 : f32 to vector<16x256xf32>
    %17 = arith.mulf %16, %15 : vector<16x256xf32>
    %cst_12 = arith.constant 0.707106769 : f32
    %18 = vector.broadcast %cst_12 : f32 to vector<16x256xf32>
    %19 = arith.mulf %15, %18 : vector<16x256xf32>
    %cst_13 = arith.constant 0.000000e+00 : f32
    %20 = vector.broadcast %cst_13 : f32 to vector<16x256xf32>
    %21 = arith.cmpf oge, %19, %20 : vector<16x256xf32>
    %cst_14 = arith.constant 1.000000e+00 : f32
    %cst_15 = arith.constant -1.000000e+00 : f32
    %22 = vector.broadcast %cst_14 : f32 to vector<16x256xf32>
    %23 = vector.broadcast %cst_15 : f32 to vector<16x256xf32>
    %24 = arith.select %21, %22, %23 : vector<16x256xi1>, vector<16x256xf32>
    %25 = math.absf %19 : vector<16x256xf32>
    %cst_16 = arith.constant 0.327591091 : f32
    %26 = vector.broadcast %cst_16 : f32 to vector<16x256xf32>
    %27 = arith.mulf %26, %25 : vector<16x256xf32>
    %cst_17 = arith.constant 1.000000e+00 : f32
    %28 = vector.broadcast %cst_17 : f32 to vector<16x256xf32>
    %29 = arith.addf %28, %27 : vector<16x256xf32>
    %cst_18 = arith.constant 1.000000e+00 : f32
    %30 = vector.broadcast %cst_18 : f32 to vector<16x256xf32>
    %31 = arith.divf %30, %29 : vector<16x256xf32>
    %cst_19 = arith.constant 1.06140542 : f32
    %32 = vector.broadcast %cst_19 : f32 to vector<16x256xf32>
    %33 = arith.mulf %32, %31 : vector<16x256xf32>
    %cst_20 = arith.constant -1.45315206 : f32
    %34 = vector.broadcast %cst_20 : f32 to vector<16x256xf32>
    %35 = arith.addf %33, %34 : vector<16x256xf32>
    %36 = arith.mulf %35, %31 : vector<16x256xf32>
    %cst_21 = arith.constant 1.42141378 : f32
    %37 = vector.broadcast %cst_21 : f32 to vector<16x256xf32>
    %38 = arith.addf %36, %37 : vector<16x256xf32>
    %39 = arith.mulf %38, %31 : vector<16x256xf32>
    %cst_22 = arith.constant -0.284496725 : f32
    %40 = vector.broadcast %cst_22 : f32 to vector<16x256xf32>
    %41 = arith.addf %39, %40 : vector<16x256xf32>
    %42 = arith.mulf %41, %31 : vector<16x256xf32>
    %cst_23 = arith.constant 0.254829586 : f32
    %43 = vector.broadcast %cst_23 : f32 to vector<16x256xf32>
    %44 = arith.addf %42, %43 : vector<16x256xf32>
    %45 = arith.mulf %44, %31 : vector<16x256xf32>
    %cst_24 = arith.constant 0.000000e+00 : f32
    %46 = vector.broadcast %cst_24 : f32 to vector<16x256xf32>
    %47 = arith.subf %46, %25 : vector<16x256xf32>
    %48 = arith.mulf %47, %25 : vector<16x256xf32>
    %49 = math.exp %48 : vector<16x256xf32>
    %50 = arith.mulf %45, %49 : vector<16x256xf32>
    %cst_25 = arith.constant 1.000000e+00 : f32
    %51 = vector.broadcast %cst_25 : f32 to vector<16x256xf32>
    %52 = arith.subf %51, %50 : vector<16x256xf32>
    %53 = arith.mulf %24, %52 : vector<16x256xf32>
    %cst_26 = arith.constant 1.000000e+00 : f32
    %54 = vector.broadcast %cst_26 : f32 to vector<16x256xf32>
    %55 = arith.addf %54, %53 : vector<16x256xf32>
    %56 = arith.mulf %17, %55 : vector<16x256xf32>
    %c0_27 = arith.constant 0 : index
    %c0_28 = arith.constant 0 : index
    %57 = vector.load %arg13[%c0_27, %c0_28] : memref<16x128xf32, #tpu.memory_space<vmem>>, vector<16x128xf32>
    %58 = arith.truncf %56 : vector<16x256xf32> to vector<16x256xbf16>
    %c0_29 = arith.constant 0 : index
    %c0_30 = arith.constant 0 : index
    %c0_31 = arith.constant 0 : index
    %59 = vector.load %arg8[%c0_29, %c0_30, %c0_31] : memref<1x256x128xbf16, #tpu.memory_space<vmem>>, vector<1x256x128xbf16>
    %60 = vector.shape_cast %59 : vector<1x256x128xbf16> to vector<256x128xbf16>
    %cst_32 = arith.constant dense<0.000000e+00> : vector<16x128xf32>
    %61 = tpu.matmul %58, %60, %cst_32 {dimension_numbers = #tpu.dot_dimension_numbers<[1], [0], [0], [1], [0, 0, 1, 1], [], []>} : vector<16x256xbf16>, vector<256x128xbf16>, vector<16x128xf32> -> vector<16x128xf32>
    %62 = arith.addf %57, %61 : vector<16x128xf32>
    %c0_33 = arith.constant 0 : index
    %c0_34 = arith.constant 0 : index
    %63 = vector.load %arg13[%c0_33, %c0_34] : memref<16x128xf32, #tpu.memory_space<vmem>>, vector<16x128xf32>
    tpu.vector_store %arg13[%c0_33, %c0_34], %62 {strides = array<i32>} : memref<16x128xf32, #tpu.memory_space<vmem>>, vector<16x128xf32>,
    %c1_i32 = arith.constant 1 : i32
    %64 = arith.cmpi eq, %arg2, %c1_i32 : i32
    %65 = arith.extui %64 : i1 to i32
    %c0_i32_35 = arith.constant 0 : i32
    %66 = arith.cmpi ne, %65, %c0_i32_35 : i32
    scf.if %66 {
      %c0_39 = arith.constant 0 : index
      %c0_40 = arith.constant 0 : index
      %72 = vector.load %arg11[%c0_39, %c0_40] : memref<16x128xf32, #tpu.memory_space<vmem>>, vector<16x128xf32>
      %c0_41 = arith.constant 0 : index
      %c0_42 = arith.constant 0 : index
      %73 = vector.load %arg13[%c0_41, %c0_42] : memref<16x128xf32, #tpu.memory_space<vmem>>, vector<16x128xf32>
      %74 = arith.addf %72, %73 : vector<16x128xf32>
      %c0_43 = arith.constant 0 : index
      %c0_44 = arith.constant 0 : index
      %c0_45 = arith.constant 0 : index
      %75 = vector.load %arg9[%c0_43, %c0_44, %c0_45] : memref<1x1x128xf32, #tpu.memory_space<vmem>>, vector<1x1x128xf32>
      %76 = vector.shape_cast %75 : vector<1x1x128xf32> to vector<1x128xf32>
      %77 = vector.broadcast %76 : vector<1x128xf32> to vector<16x128xf32>
      %78 = arith.addf %74, %77 : vector<16x128xf32>
      %c0_46 = arith.constant 0 : index
      %c0_47 = arith.constant 0 : index
      %79 = vector.load %arg11[%c0_46, %c0_47] : memref<16x128xf32, #tpu.memory_space<vmem>>, vector<16x128xf32>
      tpu.vector_store %arg11[%c0_46, %c0_47], %78 {strides = array<i32>} : memref<16x128xf32, #tpu.memory_space<vmem>>, vector<16x128xf32>,
    } else {
    }
    %c1_i32_36 = arith.constant 1 : i32
    %67 = arith.cmpi eq, %arg1, %c1_i32_36 : i32
    %c1_i32_37 = arith.constant 1 : i32
    %68 = arith.cmpi eq, %arg2, %c1_i32_37 : i32
    %69 = arith.andi %67, %68 : i1
    %70 = arith.extui %69 : i1 to i32
    %c0_i32_38 = arith.constant 0 : i32
    %71 = arith.cmpi ne, %70, %c0_i32_38 : i32
    scf.if %71 {
      %c0_39 = arith.constant 0 : index
      %c0_40 = arith.constant 0 : index
      %72 = vector.load %arg11[%c0_39, %c0_40] : memref<16x128xf32, #tpu.memory_space<vmem>>, vector<16x128xf32>
      %73 = arith.truncf %72 : vector<16x128xf32> to vector<16x128xbf16>
      %c0_41 = arith.constant 0 : index
      %c0_42 = arith.constant 0 : index
      %74 = vector.load %arg10[%c0_41, %c0_42] : memref<16x128xbf16, #tpu.memory_space<vmem>>, vector<16x128xbf16>
      tpu.vector_store %arg10[%c0_41, %c0_42], %73 {strides = array<i32>} : memref<16x128xbf16, #tpu.memory_space<vmem>>, vector<16x128xbf16>,
    } else {
    }
    return
  }
  func.func @transform_0(%arg0: i32, %arg1: i32, %arg2: i32) -> (i32, i32) {
    %c0_i32 = arith.constant 0 : i32
    %c0_i32_0 = arith.constant 0 : i32
    return %arg0, %c0_i32 : i32, i32
  }
  func.func @transform_1(%arg0: i32, %arg1: i32, %arg2: i32) -> (i32, i32, i32) {
    %c0_i32 = arith.constant 0 : i32
    %c0_i32_0 = arith.constant 0 : i32
    %c0_i32_1 = arith.constant 0 : i32
    return %arg1, %c0_i32, %c0_i32_0 : i32, i32, i32
  }
  func.func @transform_2(%arg0: i32, %arg1: i32, %arg2: i32) -> (i32, i32, i32) {
    %c0_i32 = arith.constant 0 : i32
    %c0_i32_0 = arith.constant 0 : i32
    %c0_i32_1 = arith.constant 0 : i32
    return %arg1, %c0_i32, %c0_i32_0 : i32, i32, i32
  }
  func.func @transform_3(%arg0: i32, %arg1: i32, %arg2: i32) -> (i32, i32, i32) {
    %c0_i32 = arith.constant 0 : i32
    %c0_i32_0 = arith.constant 0 : i32
    return %arg1, %c0_i32, %arg2 : i32, i32, i32
  }
  func.func @transform_4(%arg0: i32, %arg1: i32, %arg2: i32) -> (i32, i32, i32) {
    %c0_i32 = arith.constant 0 : i32
    %c0_i32_0 = arith.constant 0 : i32
    return %arg1, %c0_i32, %arg2 : i32, i32, i32
  }
  func.func @transform_5(%arg0: i32, %arg1: i32, %arg2: i32) -> (i32, i32, i32) {
    %c0_i32 = arith.constant 0 : i32
    %c0_i32_0 = arith.constant 0 : i32
    return %arg1, %arg2, %c0_i32 : i32, i32, i32
  }
  func.func @transform_6(%arg0: i32, %arg1: i32, %arg2: i32) -> (i32, i32, i32) {
    %c0_i32 = arith.constant 0 : i32
    %c0_i32_0 = arith.constant 0 : i32
    %c0_i32_1 = arith.constant 0 : i32
    return %arg1, %c0_i32, %c0_i32_0 : i32, i32, i32
  }
  func.func @transform_7(%arg0: i32, %arg1: i32, %arg2: i32) -> (i32, i32) {
    %c0_i32 = arith.constant 0 : i32
    %c0_i32_0 = arith.constant 0 : i32
    return %arg0, %c0_i32 : i32, i32
  }
}

module attributes {stable_mosaic.version = 11 : i64} {
  func.func @decoder_kernel(%arg0: i32, %arg1: i32, %arg2: memref<16x128xbf16, #tpu.memory_space<vmem>>, %arg3: memref<1x128xf32, #tpu.memory_space<vmem>>, %arg4: memref<1x128xf32, #tpu.memory_space<vmem>>, %arg5: memref<128x256xbf16, #tpu.memory_space<vmem>>, %arg6: memref<1x256xf32, #tpu.memory_space<vmem>>, %arg7: memref<16x256xf32, #tpu.memory_space<vmem>>, %arg8: memref<16x128xbf16, #tpu.memory_space<vmem>>) attributes {dimension_semantics = [#tpu.dimension_semantics<parallel>, #tpu.dimension_semantics<arbitrary>], iteration_bounds = array<i64: 1, 2>, scalar_prefetch = 0 : i64, scratch_operands = 1 : i64, tpu.core_type = #tpu.core_type<tc>, window_params = [{transform_indices = @transform_0, window_bounds = array<i64: 16, 128>}, {pipeline_mode = #tpu.pipeline_mode<synchronous>, transform_indices = @transform_1, window_bounds = array<i64: 1, 128>}, {pipeline_mode = #tpu.pipeline_mode<synchronous>, transform_indices = @transform_2, window_bounds = array<i64: 1, 128>}, {transform_indices = @transform_3, window_bounds = array<i64: 128, 256>}, {transform_indices = @transform_4, window_bounds = array<i64: 1, 256>}, {transform_indices = @transform_5, window_bounds = array<i64: 16, 256>}]} {
    %c0_i32 = arith.constant 0 : i32
    %0 = arith.cmpi eq, %arg1, %c0_i32 : i32
    %1 = arith.extui %0 : i1 to i32
    %c0_i32_0 = arith.constant 0 : i32
    %2 = arith.cmpi ne, %1, %c0_i32_0 : i32
    scf.if %2 {
      %c0_8 = arith.constant 0 : index
      %c0_9 = arith.constant 0 : index
      %10 = vector.load %arg2[%c0_8, %c0_9] : memref<16x128xbf16, #tpu.memory_space<vmem>>, vector<16x128xbf16>
      %11 = arith.extf %10 : vector<16x128xbf16> to vector<16x128xf32>
      %c0_10 = arith.constant 0 : index
      %c0_11 = arith.constant 0 : index
      %12 = vector.load %arg3[%c0_10, %c0_11] : memref<1x128xf32, #tpu.memory_space<vmem>>, vector<1x128xf32>
      %c0_12 = arith.constant 0 : index
      %c0_13 = arith.constant 0 : index
      %13 = vector.load %arg4[%c0_12, %c0_13] : memref<1x128xf32, #tpu.memory_space<vmem>>, vector<1x128xf32>
      %cst_14 = arith.constant dense<0.000000e+00> : vector<16xf32>
      %14 = vector.multi_reduction <add>, %11, %cst_14 [1] : vector<16x128xf32> to vector<16xf32>
      %15 = vector.shape_cast %14 : vector<16xf32> to vector<16x1xf32>
      %cst_15 = arith.constant 1.280000e+02 : f32
      %16 = vector.broadcast %cst_15 : f32 to vector<16x1xf32>
      %17 = arith.divf %15, %16 : vector<16x1xf32>
      %18 = vector.broadcast %17 : vector<16x1xf32> to vector<16x128xf32>
      %19 = arith.subf %11, %18 : vector<16x128xf32>
      %20 = arith.mulf %19, %19 : vector<16x128xf32>
      %cst_16 = arith.constant dense<0.000000e+00> : vector<16xf32>
      %21 = vector.multi_reduction <add>, %20, %cst_16 [1] : vector<16x128xf32> to vector<16xf32>
      %22 = vector.shape_cast %21 : vector<16xf32> to vector<16x1xf32>
      %cst_17 = arith.constant 1.280000e+02 : f32
      %23 = vector.broadcast %cst_17 : f32 to vector<16x1xf32>
      %24 = arith.divf %22, %23 : vector<16x1xf32>
      %25 = vector.broadcast %17 : vector<16x1xf32> to vector<16x128xf32>
      %26 = arith.subf %11, %25 : vector<16x128xf32>
      %cst_18 = arith.constant 9.99999974E-6 : f32
      %27 = vector.broadcast %cst_18 : f32 to vector<16x1xf32>
      %28 = arith.addf %24, %27 : vector<16x1xf32>
      %29 = math.rsqrt %28 : vector<16x1xf32>
      %30 = vector.broadcast %29 : vector<16x1xf32> to vector<16x128xf32>
      %31 = arith.mulf %26, %30 : vector<16x128xf32>
      %32 = vector.broadcast %12 : vector<1x128xf32> to vector<16x128xf32>
      %33 = arith.mulf %31, %32 : vector<16x128xf32>
      %34 = vector.broadcast %13 : vector<1x128xf32> to vector<16x128xf32>
      %35 = arith.addf %33, %34 : vector<16x128xf32>
      %36 = arith.truncf %35 : vector<16x128xf32> to vector<16x128xbf16>
      %c0_19 = arith.constant 0 : index
      %c0_20 = arith.constant 0 : index
      %37 = vector.load %arg8[%c0_19, %c0_20] : memref<16x128xbf16, #tpu.memory_space<vmem>>, vector<16x128xbf16>
      tpu.vector_store %arg8[%c0_19, %c0_20], %36 {strides = array<i32>} : memref<16x128xbf16, #tpu.memory_space<vmem>>, vector<16x128xbf16>,
    } else {
    }
    %c0 = arith.constant 0 : index
    %c0_1 = arith.constant 0 : index
    %3 = vector.load %arg8[%c0, %c0_1] : memref<16x128xbf16, #tpu.memory_space<vmem>>, vector<16x128xbf16>
    %c0_2 = arith.constant 0 : index
    %c0_3 = arith.constant 0 : index
    %4 = vector.load %arg5[%c0_2, %c0_3] : memref<128x256xbf16, #tpu.memory_space<vmem>>, vector<128x256xbf16>
    %cst = arith.constant dense<0.000000e+00> : vector<16x256xf32>
    %5 = tpu.matmul %3, %4, %cst {dimension_numbers = #tpu.dot_dimension_numbers<[1], [0], [0], [1], [0, 0, 1, 1], [], []>} : vector<16x128xbf16>, vector<128x256xbf16>, vector<16x256xf32> -> vector<16x256xf32>
    %c0_4 = arith.constant 0 : index
    %c0_5 = arith.constant 0 : index
    %6 = vector.load %arg6[%c0_4, %c0_5] : memref<1x256xf32, #tpu.memory_space<vmem>>, vector<1x256xf32>
    %7 = vector.broadcast %6 : vector<1x256xf32> to vector<16x256xf32>
    %8 = arith.addf %5, %7 : vector<16x256xf32>
    %c0_6 = arith.constant 0 : index
    %c0_7 = arith.constant 0 : index
    %9 = vector.load %arg7[%c0_6, %c0_7] : memref<16x256xf32, #tpu.memory_space<vmem>>, vector<16x256xf32>
    tpu.vector_store %arg7[%c0_6, %c0_7], %8 {strides = array<i32>} : memref<16x256xf32, #tpu.memory_space<vmem>>, vector<16x256xf32>,
    return
  }
  func.func @transform_0(%arg0: i32, %arg1: i32) -> (i32, i32) {
    %c0_i32 = arith.constant 0 : i32
    %c0_i32_0 = arith.constant 0 : i32
    return %arg0, %c0_i32 : i32, i32
  }
  func.func @transform_1(%arg0: i32, %arg1: i32) -> (i32, i32) {
    %c0_i32 = arith.constant 0 : i32
    %c0_i32_0 = arith.constant 0 : i32
    %c0_i32_1 = arith.constant 0 : i32
    return %c0_i32, %c0_i32_0 : i32, i32
  }
  func.func @transform_2(%arg0: i32, %arg1: i32) -> (i32, i32) {
    %c0_i32 = arith.constant 0 : i32
    %c0_i32_0 = arith.constant 0 : i32
    %c0_i32_1 = arith.constant 0 : i32
    return %c0_i32, %c0_i32_0 : i32, i32
  }
  func.func @transform_3(%arg0: i32, %arg1: i32) -> (i32, i32) {
    %c0_i32 = arith.constant 0 : i32
    %c0_i32_0 = arith.constant 0 : i32
    return %c0_i32, %arg1 : i32, i32
  }
  func.func @transform_4(%arg0: i32, %arg1: i32) -> (i32, i32) {
    %c0_i32 = arith.constant 0 : i32
    %c0_i32_0 = arith.constant 0 : i32
    return %c0_i32, %arg1 : i32, i32
  }
  func.func @transform_5(%arg0: i32, %arg1: i32) -> (i32, i32) {
    %c0_i32 = arith.constant 0 : i32
    return %arg0, %arg1 : i32, i32
  }
}

</mosaic_0001>

<llo_original>
// kernel: forward.3
$region0: #{forward.3}
  #allocation0 [shape = 'u32[]', space=smem, size = 0x4, offset = 0x4, fixed_abs, tag = 'smem constant byte address 0x4 - core index']
  #allocation1 [shape = 'u32[144,128]{1,0:T(1,128)}', space=vmem, size = 0x12000, scoped, tag = 'internal scratch']
  #allocation2 [shape = 'bf16[16,128]{1,0:T(16,128)(2,1)}', space=vmem, size = 0x1000, scoped, tag = 'scratch operand']
  %s0 = inlined_call_operand.vmem [shape: bf16[16,128], index: 0, kind: input, shape index: {}]
  %s1 = inlined_call_operand.vmem [shape: f32[1,128], index: 1, kind: input, shape index: {}]
  %s2 = inlined_call_operand.vmem [shape: f32[1,128], index: 2, kind: input, shape index: {}]
  %s3 = inlined_call_operand.vmem [shape: bf16[128,512], index: 3, kind: input, shape index: {}]
  %s4 = inlined_call_operand.vmem [shape: f32[1,512], index: 4, kind: input, shape index: {}]
  %s5 = inlined_call_operand.hbm [shape: f32[16,512], index: 5, kind: output, shape index: {}]
  %s6 = sld [smem:[#allocation0]]
  $region95: #{forward.3} parent=0
    _
  %s8 = ssub.s32 1, %s6
  %s9 = scalar_select 0, %s8, %s6
  $region1: #{forward.3} parent=0
    #allocation3 [shape = 'u8[131072]{0}', space=vmem, size = 0x20000, scoped, tag = 'input window, operand 3']
    #allocation4 [shape = 'u8[32768]{0}', space=vmem, size = 0x8000, scoped, tag = 'output window, operand 0']
    #allocation5 [shape = 's32[2]{0}', space=sflag, size = 0x8, scoped, tag = 'scoped memory for forward.3']
    %10 = vsyncpa [#allocation5], 0
    %s11 = scalar_lea.sflag [#allocation5], 1
    %12 = vsyncpa %s11, 0
    loop: start=0, step=1, limit=4
    $region2: #{forward.3} parent=1 // loop_pre_header
      _
    $region3: #{forward.3} parent=1 // loop_header
      %s14 = sphi 0, %s18
      %p15 = scmp.ge.s32.totalorder %s14, 4
      %s21 = sphi 0, %s33
      %s22 = sphi 0, %s29
      %s23 = sphi 0, %s21
      %s24 = sphi 0, %s22
      %s25 = sphi 0, %s23
      %s26 = sphi 0, %s24
      %s36 = sphi 0, %s38
      %s39 = sphi 0, %s36
      %s40 = sphi 0, %s39
      %s56 = sphi 0, %s40
      %s60 = sphi 0, %s60
      %s62 = sphi 0, %s60
      %s63 = sphi 0, %s62
      %s77 = sphi 0, %s63
      %s81 = sphi 0, %s81
      %s83 = sphi 0, %s81
      %s84 = sphi 0, %s83
      %s98 = sphi 0, %s84
      %s104 = sphi 0, %s106
      %s107 = sphi 0, %s104
      %s108 = sphi 0, %s107
      %s124 = sphi 0, %s108
      %s130 = sphi 0, %s132
      %s133 = sphi 0, %s130
      %s134 = sphi 0, %s133
      %s150 = sphi 0, %s134
      %s158 = sphi 0, %s160
      %s161 = sphi 0, %s158
      %s162 = sphi 0, %s161
      %s178 = sphi 0, %s162
    $region4: #{forward.3} parent=1 // loop_header_branch
      %17 = sbr.rel (%p15) target = $region8
    $region5: #{forward.3} parent=1 // loop_body
      %s19 = ssub.s32 %s14, 1
      %s20 = ssub.s32 %s14, 2
      %s27 = sadd.s32 1, %s22
      %p28 = scmp.ge.s32.totalorder %s27, 2
      %s29 = scalar_select %p28, 0, %s27
      %s30 = sadd.s32 1, %s21
      %s31 = scalar_select %p28, %s30, %s21
      %p32 = scmp.ge.s32.totalorder %s31, 1
      %s33 = scalar_select %p32, 0, %s31
      %s34 = ssub.s32 %s21, %s33
      %p35 = scmp.eq.s32.totalorder %s34, 0
      %s37 = sadd.s32 %s36, 1
      %s38 = scalar_select %p35, %s36, %s37
      %p41 = pneg %p35
      %p42 = scmp.eq.s32.totalorder %s14, 1
      %p43 = por %p41, %p42
      %p44 = scmp.ne.s32.totalorder %s36, %s39
      %p45 = scmp.eq.s32.totalorder %s14, 0
      %p46 = por %p44, %p45
      %p47 = scmp.ne.s32.totalorder %s36, %s39
      %p48 = scmp.eq.s32.totalorder %s19, 1
      %p49 = por %p47, %p48
      %p50 = scmp.ne.s32.totalorder %s39, %s40
      %p51 = scmp.eq.s32.totalorder %s19, 0
      %p52 = por %p50, %p51
      %p53 = scmp.ne.s32.totalorder %s39, %s40
      %p54 = scmp.eq.s32.totalorder %s20, 1
      %p55 = por %p53, %p54
      %p57 = scmp.ne.s32.totalorder %s40, %s56
      %p58 = scmp.eq.s32.totalorder %s20, 0
      %p59 = por %p57, %p58
      %s61 = sadd.s32 %s60, 1
      %p64 = scmp.eq.s32.totalorder %s14, 1
      %p65 = scmp.ne.s32.totalorder %s60, %s62
      %p66 = scmp.eq.s32.totalorder %s14, 0
      %p67 = por %p65, %p66
      %p68 = scmp.ne.s32.totalorder %s60, %s62
      %p69 = scmp.eq.s32.totalorder %s19, 1
      %p70 = por %p68, %p69
      %p71 = scmp.ne.s32.totalorder %s62, %s63
      %p72 = scmp.eq.s32.totalorder %s19, 0
      %p73 = por %p71, %p72
      %p74 = scmp.ne.s32.totalorder %s62, %s63
      %p75 = scmp.eq.s32.totalorder %s20, 1
      %p76 = por %p74, %p75
      %p78 = scmp.ne.s32.totalorder %s63, %s77
      %p79 = scmp.eq.s32.totalorder %s20, 0
      %p80 = por %p78, %p79
      %s82 = sadd.s32 %s81, 1
      %p85 = scmp.eq.s32.totalorder %s14, 1
      %p86 = scmp.ne.s32.totalorder %s81, %s83
      %p87 = scmp.eq.s32.totalorder %s14, 0
      %p88 = por %p86, %p87
      %p89 = scmp.ne.s32.totalorder %s81, %s83
      %p90 = scmp.eq.s32.totalorder %s19, 1
      %p91 = por %p89, %p90
      %p92 = scmp.ne.s32.totalorder %s83, %s84
      %p93 = scmp.eq.s32.totalorder %s19, 0
      %p94 = por %p92, %p93
      %p95 = scmp.ne.s32.totalorder %s83, %s84
      %p96 = scmp.eq.s32.totalorder %s20, 1
      %p97 = por %p95, %p96
      %p99 = scmp.ne.s32.totalorder %s84, %s98
      %p100 = scmp.eq.s32.totalorder %s20, 0
      %p101 = por %p99, %p100
      %s102 = ssub.s32 %s22, %s29
      %p103 = scmp.eq.s32.totalorder %s102, 0
      %s105 = sadd.s32 %s104, 1
      %s106 = scalar_select %p103, %s104, %s105
      %p109 = pneg %p103
      %p110 = scmp.eq.s32.totalorder %s14, 1
      %p111 = por %p109, %p110
      %p112 = scmp.ne.s32.totalorder %s104, %s107
      %p113 = scmp.eq.s32.totalorder %s14, 0
      %p114 = por %p112, %p113
      %p115 = scmp.ne.s32.totalorder %s104, %s107
      %p116 = scmp.eq.s32.totalorder %s19, 1
      %p117 = por %p115, %p116
      %p118 = scmp.ne.s32.totalorder %s107, %s108
      %p119 = scmp.eq.s32.totalorder %s19, 0
      %p120 = por %p118, %p119
      %p121 = scmp.ne.s32.totalorder %s107, %s108
      %p122 = scmp.eq.s32.totalorder %s20, 1
      %p123 = por %p121, %p122
      %p125 = scmp.ne.s32.totalorder %s108, %s124
      %p126 = scmp.eq.s32.totalorder %s20, 0
      %p127 = por %p125, %p126
      %s128 = ssub.s32 %s22, %s29
      %p129 = scmp.eq.s32.totalorder %s128, 0
      %s131 = sadd.s32 %s130, 1
      %s132 = scalar_select %p129, %s130, %s131
      %p135 = pneg %p129
      %p136 = scmp.eq.s32.totalorder %s14, 1
      %p137 = por %p135, %p136
      %p138 = scmp.ne.s32.totalorder %s130, %s133
      %p139 = scmp.eq.s32.totalorder %s14, 0
      %p140 = por %p138, %p139
      %p141 = scmp.ne.s32.totalorder %s130, %s133
      %p142 = scmp.eq.s32.totalorder %s19, 1
      %p143 = por %p141, %p142
      %p144 = scmp.ne.s32.totalorder %s133, %s134
      %p145 = scmp.eq.s32.totalorder %s19, 0
      %p146 = por %p144, %p145
      %p147 = scmp.ne.s32.totalorder %s133, %s134
      %p148 = scmp.eq.s32.totalorder %s20, 1
      %p149 = por %p147, %p148
      %p151 = scmp.ne.s32.totalorder %s134, %s150
      %p152 = scmp.eq.s32.totalorder %s20, 0
      %p153 = por %p151, %p152
      %s154 = ssub.s32 %s21, %s33
      %s155 = ssub.s32 %s22, %s29
      %s156 = sor.u32 %s154, %s155
      %p157 = scmp.eq.s32.totalorder %s156, 0
      %s159 = sadd.s32 %s158, 1
      %s160 = scalar_select %p157, %s158, %s159
      %p163 = pneg %p157
      %p164 = scmp.eq.s32.totalorder %s14, 1
      %p165 = por %p163, %p164
      %p166 = scmp.ne.s32.totalorder %s158, %s161
      %p167 = scmp.eq.s32.totalorder %s14, 0
      %p168 = por %p166, %p167
      %p169 = scmp.ne.s32.totalorder %s158, %s161
      %p170 = scmp.eq.s32.totalorder %s19, 1
      %p171 = por %p169, %p170
      %p172 = scmp.ne.s32.totalorder %s161, %s162
      %p173 = scmp.eq.s32.totalorder %s19, 0
      %p174 = por %p172, %p173
      %p175 = scmp.ne.s32.totalorder %s161, %s162
      %p176 = scmp.eq.s32.totalorder %s20, 1
      %p177 = por %p175, %p176
      %p179 = scmp.ne.s32.totalorder %s162, %s178
      %p180 = scmp.eq.s32.totalorder %s20, 0
      %p181 = por %p179, %p180
      %p182 = scmp.le.s32.totalorder 1, %s14
      %p183 = scmp.lt.s32.totalorder %s14, 3
      %p184 = pnand %p182, %p183
      %p185 = pneg %p184
      // Predicated region
      $region9: #{forward.3} parent=5 // pred_check
        _
      $region10: #{forward.3} parent=5 // pred_check_branch
        %187 = sbr.rel (%p184) target = $region12
      $region11: #{forward.3} parent=5 // pred_region
        %s188 = ssub.s32 %s14, 1
        // Predicated region
        $region13: #{forward.3} parent=11 // pred_check
          %p189 = pneg %p52
        $region14: #{forward.3} parent=11 // pred_check_branch
          %191 = sbr.rel (%p189) target = $region16
        $region15: #{forward.3} parent=11 // pred_region
          %s192 = smul.u32 2, %s23
          %p193 = scmp.lt.s32.totalorder %s192, 1
          %s194 = scalar_select %p193, %s192, 1
          %s195 = smul.addr %s194, 4
          %s196 = scalar_lea.vmem %s0, %s195
          %s197 = smul.u32 2, %s23
        $region16: #{forward.3} parent=11 // pred_fallthru
          _
        // Predicated region
        $region17: #{forward.3} parent=11 // pred_check
          %p198 = pneg %p73
        $region18: #{forward.3} parent=11 // pred_check_branch
          %200 = sbr.rel (%p198) target = $region20
        $region19: #{forward.3} parent=11 // pred_region
          _
        $region20: #{forward.3} parent=11 // pred_fallthru
          _
        // Predicated region
        $region21: #{forward.3} parent=11 // pred_check
          %p201 = pneg %p94
        $region22: #{forward.3} parent=11 // pred_check_branch
          %203 = sbr.rel (%p201) target = $region24
        $region23: #{forward.3} parent=11 // pred_region
          _
        $region24: #{forward.3} parent=11 // pred_fallthru
          _
      $region12: #{forward.3} parent=5 // pred_fallthru
        _
      %p204 = scmp.lt.s32.totalorder %s14, 2
      // Predicated region
      $region25: #{forward.3} parent=5 // pred_check
        %p205 = pneg %p204
      $region26: #{forward.3} parent=5 // pred_check_branch
        %207 = sbr.rel (%p205) target = $region28
      $region27: #{forward.3} parent=5 // pred_region
        // Predicated region
        $region29: #{forward.3} parent=27 // pred_check
          %p208 = pneg %p114
        $region30: #{forward.3} parent=27 // pred_check_branch
          %210 = sbr.rel (%p208) target = $region32
        $region31: #{forward.3} parent=27 // pred_region
          %s211 = sand.u32 %s104, 1
          %s212 = sand.u32 %s104, 1
          %s213 = smul.addr %s212, 128
          %s214 = scalar_lea.vmem [#allocation3], %s213
          %s215 = smul.u32 2, %s22
          %s216 = smul.addr %s215, 4
          %s217 = scalar_lea.vmem %s3, %s216
          // Predicated region
          $region33: #{forward.3} parent=31 // pred_check
            _
          $region34: #{forward.3} parent=31 // pred_check_branch
            %219 = sbr.rel (0) target = $region36
          $region35: #{forward.3} parent=31 // pred_region
            // Predicated region
            $region37: #{forward.3} parent=35 // pred_check
              _
            $region38: #{forward.3} parent=35 // pred_check_branch
              %221 = sbr.rel (0) target = $region40
            $region39: #{forward.3} parent=35 // pred_region
              // Predicated region
              $region52: #{forward.3} parent=39 // pred_check
                _
              $region53: #{forward.3} parent=39 // pred_check_branch
                %266 = sbr.rel (0) target = $region55
              $region54: #{forward.3} parent=39 // pred_region
                loop: start=0, step=1, limit=1
                $region56: #{forward.3} parent=54 // loop_pre_header
                  _
                $region57: #{forward.3} parent=54 // loop_header
                  %s268 = sphi 0, %s272
                  %p269 = scmp.ge.s32.totalorder %s268, 1
                  %s273 = sphi %s217, %s217
                  %s274 = sphi %s214, %s214
                $region58: #{forward.3} parent=54 // loop_header_branch
                  %271 = sbr.rel (%p269) target = $region62
                $region59: #{forward.3} parent=54 // loop_body
                  %v275 = vld [vmem:[%s273] sm:$0xff]
                  %276 = vst [vmem:[%s274] sm:$0xff] %v275
                  %v277 = vld [vmem:[%s273 + $0x10] sm:$0xff]
                  %278 = vst [vmem:[%s274 + $0x8] sm:$0xff] %v277
                  %v279 = vld [vmem:[%s273 + $0x20] sm:$0xff]
                  %280 = vst [vmem:[%s274 + $0x10] sm:$0xff] %v279
                  %v281 = vld [vmem:[%s273 + $0x30] sm:$0xff]
                  %282 = vst [vmem:[%s274 + $0x18] sm:$0xff] %v281
                  %v283 = vld [vmem:[%s273 + $0x40] sm:$0xff]
                  %284 = vst [vmem:[%s274 + $0x20] sm:$0xff] %v283
                  %v285 = vld [vmem:[%s273 + $0x50] sm:$0xff]
                  %286 = vst [vmem:[%s274 + $0x28] sm:$0xff] %v285
                  %v287 = vld [vmem:[%s273 + $0x60] sm:$0xff]
                  %288 = vst [vmem:[%s274 + $0x30] sm:$0xff] %v287
                  %v289 = vld [vmem:[%s273 + $0x70] sm:$0xff]
                  %290 = vst [vmem:[%s274 + $0x38] sm:$0xff] %v289
                  %v291 = vld [vmem:[%s273 + $0x80] sm:$0xff]
                  %292 = vst [vmem:[%s274 + $0x40] sm:$0xff] %v291
                  %v293 = vld [vmem:[%s273 + $0x90] sm:$0xff]
                  %294 = vst [vmem:[%s274 + $0x48] sm:$0xff] %v293
                  %v295 = vld [vmem:[%s273 + $0xa0] sm:$0xff]
                  %296 = vst [vmem:[%s274 + $0x50] sm:$0xff] %v295
                  %v297 = vld [vmem:[%s273 + $0xb0] sm:$0xff]
                  %298 = vst [vmem:[%s274 + $0x58] sm:$0xff] %v297
                  %v299 = vld [vmem:[%s273 + $0xc0] sm:$0xff]
                  %300 = vst [vmem:[%s274 + $0x60] sm:$0xff] %v299
                  %v301 = vld [vmem:[%s273 + $0xd0] sm:$0xff]
                  %302 = vst [vmem:[%s274 + $0x68] sm:$0xff] %v301
                  %v303 = vld [vmem:[%s273 + $0xe0] sm:$0xff]
                  %304 = vst [vmem:[%s274 + $0x70] sm:$0xff] %v303
                  %v305 = vld [vmem:[%s273 + $0xf0] sm:$0xff]
                  %306 = vst [vmem:[%s274 + $0x78] sm:$0xff] %v305
                $region60: #{forward.3} parent=54 // loop_footer
                  %s272 = sadd.s32 1, %s268
                $region61: #{forward.3} parent=54 // loop_footer_branch
                  %267 = sbr.rel target = $region57
                $region62: #{forward.3} parent=54 // loop_exit
                  _
              $region55: #{forward.3} parent=39 // pred_fallthru
                _
              // Predicated region
              $region63: #{forward.3} parent=39 // pred_check
                _
              $region64: #{forward.3} parent=39 // pred_check_branch
                %308 = sbr.rel target = $region66
              $region65: #{forward.3} parent=39 // pred_region
                _
              $region66: #{forward.3} parent=39 // pred_fallthru
                _
            $region40: #{forward.3} parent=35 // pred_fallthru
              _
            // Predicated region
            $region41: #{forward.3} parent=35 // pred_check
              _
            $region42: #{forward.3} parent=35 // pred_check_branch
              %223 = sbr.rel target = $region44
            $region43: #{forward.3} parent=35 // pred_region
              loop: start=0, step=1, limit=1
              $region45: #{forward.3} parent=43 // loop_pre_header
                _
              $region46: #{forward.3} parent=43 // loop_header
                %s226 = sphi 0, %s230
                %p227 = scmp.ge.s32.totalorder %s226, 1
                %s231 = sphi %s217, %s217
                %s232 = sphi %s214, %s214
              $region47: #{forward.3} parent=43 // loop_header_branch
                %229 = sbr.rel (%p227) target = $region51
              $region48: #{forward.3} parent=43 // loop_body
                %v233 = vld [vmem:[%s231] sm:$0xff]
                %234 = vst [vmem:[%s232] sm:$0xff] %v233
                %v235 = vld [vmem:[%s231 + $0x10] sm:$0xff]
                %236 = vst [vmem:[%s232 + $0x8] sm:$0xff] %v235
                %v237 = vld [vmem:[%s231 + $0x20] sm:$0xff]
                %238 = vst [vmem:[%s232 + $0x10] sm:$0xff] %v237
                %v239 = vld [vmem:[%s231 + $0x30] sm:$0xff]
                %240 = vst [vmem:[%s232 + $0x18] sm:$0xff] %v239
                %v241 = vld [vmem:[%s231 + $0x40] sm:$0xff]
                %242 = vst [vmem:[%s232 + $0x20] sm:$0xff] %v241
                %v243 = vld [vmem:[%s231 + $0x50] sm:$0xff]
                %244 = vst [vmem:[%s232 + $0x28] sm:$0xff] %v243
                %v245 = vld [vmem:[%s231 + $0x60] sm:$0xff]
                %246 = vst [vmem:[%s232 + $0x30] sm:$0xff] %v245
                %v247 = vld [vmem:[%s231 + $0x70] sm:$0xff]
                %248 = vst [vmem:[%s232 + $0x38] sm:$0xff] %v247
                %v249 = vld [vmem:[%s231 + $0x80] sm:$0xff]
                %250 = vst [vmem:[%s232 + $0x40] sm:$0xff] %v249
                %v251 = vld [vmem:[%s231 + $0x90] sm:$0xff]
                %252 = vst [vmem:[%s232 + $0x48] sm:$0xff] %v251
                %v253 = vld [vmem:[%s231 + $0xa0] sm:$0xff]
                %254 = vst [vmem:[%s232 + $0x50] sm:$0xff] %v253
                %v255 = vld [vmem:[%s231 + $0xb0] sm:$0xff]
                %256 = vst [vmem:[%s232 + $0x58] sm:$0xff] %v255
                %v257 = vld [vmem:[%s231 + $0xc0] sm:$0xff]
                %258 = vst [vmem:[%s232 + $0x60] sm:$0xff] %v257
                %v259 = vld [vmem:[%s231 + $0xd0] sm:$0xff]
                %260 = vst [vmem:[%s232 + $0x68] sm:$0xff] %v259
                %v261 = vld [vmem:[%s231 + $0xe0] sm:$0xff]
                %262 = vst [vmem:[%s232 + $0x70] sm:$0xff] %v261
                %v263 = vld [vmem:[%s231 + $0xf0] sm:$0xff]
                %264 = vst [vmem:[%s232 + $0x78] sm:$0xff] %v263
              $region49: #{forward.3} parent=43 // loop_footer
                %s230 = sadd.s32 1, %s226
              $region50: #{forward.3} parent=43 // loop_footer_branch
                %225 = sbr.rel target = $region46
              $region51: #{forward.3} parent=43 // loop_exit
                _
            $region44: #{forward.3} parent=35 // pred_fallthru
              _
          $region36: #{forward.3} parent=31 // pred_fallthru
            _
          %309 = vnop
        $region32: #{forward.3} parent=27 // pred_fallthru
          _
        // Predicated region
        $region67: #{forward.3} parent=27 // pred_check
          %p310 = pneg %p140
        $region68: #{forward.3} parent=27 // pred_check_branch
          %312 = sbr.rel (%p310) target = $region70
        $region69: #{forward.3} parent=27 // pred_region
          %s313 = smul.u32 2, %s22
          %p314 = scmp.lt.s32.totalorder %s313, 3
          %s315 = scalar_select %p314, %s313, 3
          %s316 = scalar_lea.vmem %s4, %s315
          %s317 = smul.u32 2, %s22
        $region70: #{forward.3} parent=27 // pred_fallthru
          _
      $region28: #{forward.3} parent=5 // pred_fallthru
        _
      %p318 = scmp.le.s32.totalorder 1, %s14
      %p319 = scmp.lt.s32.totalorder %s14, 3
      %p320 = pnand %p318, %p319
      %p321 = pneg %p320
      // Predicated region
      $region71: #{forward.3} parent=5 // pred_check
        _
      $region72: #{forward.3} parent=5 // pred_check_branch
        %323 = sbr.rel (%p320) target = $region74
      $region73: #{forward.3} parent=5 // pred_region
        %s324 = ssub.s32 %s14, 1
        %s325 = sand.u32 %s107, 1
        %s326 = sand.u32 %s107, 1
        %s327 = smul.addr %s326, 128
        %s328 = scalar_lea.vmem [#allocation3], %s327
        // Predicated region
        $region75: #{forward.3} parent=73 // pred_check
          %p329 = pneg %p120
        $region76: #{forward.3} parent=73 // pred_check_branch
          %331 = sbr.rel (%p329) target = $region78
        $region77: #{forward.3} parent=73 // pred_region
          _
        $region78: #{forward.3} parent=73 // pred_fallthru
          _
        %s332 = smul.u32 2, %s23
        %p333 = scmp.lt.s32.totalorder %s332, 1
        %s334 = scalar_select %p333, %s332, 1
        %s335 = smul.addr %s334, 4
        %s336 = scalar_lea.vmem %s0, %s335
        %p337 = pneg %p52
        %p338 = pneg %p49
        %p339 = pneg %p73
        %p340 = pneg %p70
        %p341 = pneg %p94
        %p342 = pneg %p91
        %s343 = sand.u32 %s107, 1
        %s344 = sand.u32 %s107, 1
        %s345 = smul.addr %s344, 128
        %s346 = scalar_lea.vmem [#allocation3], %s345
        %p347 = pneg %p120
        %p348 = pneg %p117
        %s349 = smul.u32 2, %s24
        %p350 = scmp.lt.s32.totalorder %s349, 3
        %s351 = scalar_select %p350, %s349, 3
        %s352 = scalar_lea.vmem %s4, %s351
        %p353 = pneg %p146
        %p354 = pneg %p143
        %p355 = pneg %p174
        %p356 = pneg %p171
        %s357 = sand.u32 %s161, 1
        %s358 = scalar_lea.sflag [#allocation5], %s357
        %s359 = sand.u32 %s161, 1
        %s360 = smul.addr %s359, 32
        %s361 = scalar_lea.vmem [#allocation4], %s360
        %s362 = smul.u32 2, %s23
        %p363 = scmp.lt.s32.totalorder %s362, 1
        %s364 = scalar_select %p363, %s362, 1
        %s365 = smul.addr %s364, 4
        %s366 = scalar_lea.vmem %s0, %s365
        %s367 = smul.u32 2, %s23
        %s368 = smul.u32 2, %s24
        %s369 = smul.u32 2, %s24
        %p370 = scmp.lt.s32.totalorder %s369, 3
        %s371 = scalar_select %p370, %s369, 3
        %s372 = scalar_lea.vmem %s4, %s371
        %s373 = smul.u32 2, %s24
        %s374 = smul.u32 2, %s23
        %s375 = smul.u32 2, %s24
        %p377 = scmp.eq.s32.totalorder %s24, 0
        // Predicated region
        $region79: #{forward.3} parent=73 // pred_check
          %p378 = pneg %p377
        $region80: #{forward.3} parent=73 // pred_check_branch
          %380 = sbr.rel (%p378) target = $region82
        $region81: #{forward.3} parent=73 // pred_region
          %v381 = vld [vmem:[%s366] sm:$0xf]
          %v382 = vld [vmem:[%s366 + $0x4] sm:$0xf]
          %v383 = vunpack.c.l.bf16 %v381
          %v384 = vunpack.c.l.bf16 %v382
          %v385 = vld [vmem:[%s1] sm:$0x1]
          %v386 = vld [vmem:[%s2] sm:$0x1]
          %387 = vadd.xlane.f32.xlu0 %v383
          %v388 = vpop.xlane.xlu0 %387
          %389 = vadd.xlane.f32.xlu0 %v384
          %v390 = vpop.xlane.xlu0 %389
          %v391 = vrcp.pop 128.0
          %v392 = vmul.f32 %v388, %v391
          %v393 = vmul.f32 %v390, %v391
          %v394 = vsub.f32 %v383, %v392
          %v395 = vsub.f32 %v384, %v393
          %v396 = vmul.f32 %v394, %v394
          %v397 = vmul.f32 %v395, %v395
          %398 = vadd.xlane.f32.xlu0 %v396
          %v399 = vpop.xlane.xlu0 %398
          %400 = vadd.xlane.f32.xlu0 %v397
          %v401 = vpop.xlane.xlu0 %400
          %v402 = vmul.f32 %v399, %v391
          %v403 = vmul.f32 %v401, %v391
          %v404 = vadd.f32 %v402, 1e-05
          %v405 = vadd.f32 %v403, 1e-05
          %v406 = vrsqrt.pop %v404
          %v407 = vrsqrt.pop %v405
          %v408 = vmul.f32 %v394, %v406
          %v409 = vmul.f32 %v395, %v407
          %v411 = vlaneseq
          %v412 = vshrl.u32 %v411, 7
          %v413 = vsub.s32 0, %v412
          %v414 = vrot.slane %v385, %v413
          %v416 = vmul.f32 %v408, %v414
          %v417 = vmul.f32 %v409, %v414
          %v419 = vlaneseq
          %v420 = vshrl.u32 %v419, 7
          %v421 = vsub.s32 0, %v420
          %v422 = vrot.slane %v386, %v421
          %v424 = vadd.f32 %v416, %v422
          %v425 = vadd.f32 %v417, %v422
          %v426 = vpack.c.bf16 %v425, %v424
          %427 = vst [vmem:[#allocation2] sm:$0xff] %v426
        $region82: #{forward.3} parent=73 // pred_fallthru
          _
        %v428 = vld [vmem:[#allocation2] sm:$0xff]
        %v429 = vld [vmem:[%s328] sm:$0xff]
        %v430 = vld [vmem:[%s328 + $0x8] sm:$0xff]
        %v431 = vld [vmem:[%s328 + $0x10] sm:$0xff]
        %v432 = vld [vmem:[%s328 + $0x18] sm:$0xff]
        %v433 = vld [vmem:[%s328 + $0x20] sm:$0xff]
        %v434 = vld [vmem:[%s328 + $0x28] sm:$0xff]
        %v435 = vld [vmem:[%s328 + $0x30] sm:$0xff]
        %v436 = vld [vmem:[%s328 + $0x38] sm:$0xff]
        %v437 = vld [vmem:[%s328 + $0x40] sm:$0xff]
        %v438 = vld [vmem:[%s328 + $0x48] sm:$0xff]
        %v439 = vld [vmem:[%s328 + $0x50] sm:$0xff]
        %v440 = vld [vmem:[%s328 + $0x58] sm:$0xff]
        %v441 = vld [vmem:[%s328 + $0x60] sm:$0xff]
        %v442 = vld [vmem:[%s328 + $0x68] sm:$0xff]
        %v443 = vld [vmem:[%s328 + $0x70] sm:$0xff]
        %v444 = vld [vmem:[%s328 + $0x78] sm:$0xff]
        %v445 = vld [vmem:[%s372] sm:$0x3]
        %v447 = vlaneseq
        %v448 = vshrl.u32 %v447, 7
        %v449 = vsub.s32 0, %v448
        %v450 = vrot.slane %v445, %v449
        %v451 = vlaneseq
        %v452 = vshrl.u32 %v451, 7
        %v453 = vsub.s32 1, %v452
        %v454 = vrot.slane %v445, %v453
        %v473 = vunpack.c.l.b16 %v429
        %v474 = vunpack.c.h.b16 %v429
        %v475 = vunpack.c.l.b16 %v430
        %v476 = vunpack.c.h.b16 %v430
        %v477 = vunpack.c.l.b16 %v431
        %v478 = vunpack.c.h.b16 %v431
        %v479 = vunpack.c.l.b16 %v432
        %v480 = vunpack.c.h.b16 %v432
        %v481 = vunpack.c.l.b16 %v433
        %v482 = vunpack.c.h.b16 %v433
        %v483 = vunpack.c.l.b16 %v434
        %v484 = vunpack.c.h.b16 %v434
        %v485 = vunpack.c.l.b16 %v435
        %v486 = vunpack.c.h.b16 %v435
        %v487 = vunpack.c.l.b16 %v436
        %v488 = vunpack.c.h.b16 %v436
        %v489 = vunpack.c.l.b16 %v437
        %v490 = vunpack.c.h.b16 %v437
        %v491 = vunpack.c.l.b16 %v438
        %v492 = vunpack.c.h.b16 %v438
        %v493 = vunpack.c.l.b16 %v439
        %v494 = vunpack.c.h.b16 %v439
        %v495 = vunpack.c.l.b16 %v440
        %v496 = vunpack.c.h.b16 %v440
        %v497 = vunpack.c.l.b16 %v441
        %v498 = vunpack.c.h.b16 %v441
        %v499 = vunpack.c.l.b16 %v442
        %v500 = vunpack.c.h.b16 %v442
        %v501 = vunpack.c.l.b16 %v443
        %v502 = vunpack.c.h.b16 %v443
        %v503 = vunpack.c.l.b16 %v444
        %v504 = vunpack.c.h.b16 %v444
        %v505 = vpack.c.b16 %v475, %v473
        %v506 = vpack.c.b16 %v476, %v474
        %v507 = vpack.c.b16 %v479, %v477
        %v508 = vpack.c.b16 %v480, %v478
        %v509 = vpack.c.b16 %v483, %v481
        %v510 = vpack.c.b16 %v484, %v482
        %v511 = vpack.c.b16 %v487, %v485
        %v512 = vpack.c.b16 %v488, %v486
        %v513 = vpack.c.b16 %v491, %v489
        %v514 = vpack.c.b16 %v492, %v490
        %v515 = vpack.c.b16 %v495, %v493
        %v516 = vpack.c.b16 %v496, %v494
        %v517 = vpack.c.b16 %v499, %v497
        %v518 = vpack.c.b16 %v500, %v498
        %v519 = vpack.c.b16 %v503, %v501
        %v520 = vpack.c.b16 %v504, %v502
        %537 = vmatprep.subr.bf16.mxu0 %v506
        %538 = vmatpush1.bf16.msra.mxu0 %v505
        %539 = vmatprep.subr.bf16.mxu0 %v508
        %540 = vmatpush1.bf16.msra.mxu0 %v507
        %541 = vmatprep.subr.bf16.mxu0 %v510
        %542 = vmatpush1.bf16.msra.mxu0 %v509
        %543 = vmatprep.subr.bf16.mxu0 %v512
        %544 = vmatpush1.bf16.msra.mxu0 %v511
        %545 = vmatprep.subr.bf16.mxu0 %v514
        %546 = vmatpush1.bf16.msra.mxu0 %v513
        %547 = vmatprep.subr.bf16.mxu0 %v516
        %548 = vmatpush1.bf16.msra.mxu0 %v515
        %549 = vmatprep.subr.bf16.mxu0 %v518
        %550 = vmatpush1.bf16.msra.mxu0 %v517
        %551 = vmatprep.subr.bf16.mxu0 %v520
        %552 = vmatpush1.bf16.msra.mxu0 %v519
        %553 = vmatprep.subr.bf16.mxu0 0
        %554 = vmatpush1.bf16.msra.mxu0 0
        %555 = vmatprep.subr.bf16.mxu0 0
        %556 = vmatpush1.bf16.msra.mxu0 0
        %557 = vmatprep.subr.bf16.mxu0 0
        %558 = vmatpush1.bf16.msra.mxu0 0
        %559 = vmatprep.subr.bf16.mxu0 0
        %560 = vmatpush1.bf16.msra.mxu0 0
        %561 = vmatprep.subr.bf16.mxu0 0
        %562 = vmatpush1.bf16.msra.mxu0 0
        %563 = vmatprep.subr.bf16.mxu0 0
        %564 = vmatpush1.bf16.msra.mxu0 0
        %565 = vmatprep.subr.bf16.mxu0 0
        %566 = vmatpush1.bf16.msra.mxu0 0
        %567 = vmatprep.subr.bf16.mxu0 0
        %568 = vmatpush1.bf16.msra.mxu0 0
        %569 = vmatprep.mubr.bf16.mxu0 0
        %570 = vmatmul.mubr.bf16.gmra.mrb[0].mxu0 %v428
        %v571 = vpop.f32.mrb[0].mxu0
        %v572 = vadd.f32 %v450, %v571
        %v573 = vpop.f32.mrb[0].mxu0
        %v574 = vadd.f32 %v454, %v573
        %v575 = vpop.f32.mrb[0].mxu0
        %v576 = vadd.f32 %v450, %v575
        %v577 = vpop.f32.mrb[0].mxu0
        %v578 = vadd.f32 %v454, %v577
        %579 = vdwg.mxu0
        %580 = vst [vmem:[%s361] sm:$0xff] %v572
        %581 = vst [vmem:[%s361 + $0x8] sm:$0xff] %v574
        %582 = vst [vmem:[%s361 + $0x10] sm:$0xff] %v576
        %583 = vst [vmem:[%s361 + $0x18] sm:$0xff] %v578
        %s584 = sand.u32 %s161, 1
        %s585 = scalar_lea.sflag [#allocation5], %s584
        %s586 = sand.u32 %s161, 1
        %s587 = smul.addr %s586, 32
        %s588 = scalar_lea.vmem [#allocation4], %s587
        // Predicated region
        $region83: #{forward.3} parent=73 // pred_check
          %p589 = pneg %p171
        $region84: #{forward.3} parent=73 // pred_check_branch
          %591 = sbr.rel (%p589) target = $region86
        $region85: #{forward.3} parent=73 // pred_region
          %s592 = smul.u32 2, %s23
          %s593 = smul.u32 2, %s24
          %s595 = ssub.s32 512, 512
          %596 = vsyncadd %s585, %s595
          %s597 = smul.addr %s592, 4
          %s598 = sadd.s32 %s593, %s597
          %s599 = smul.addr %s598, 128
          %s600 = scalar_lea.hbm %s5, %s599
          %s601 = sshll.u32 %s588, 4
          %s602 = int_to_ptr.vmem [resolvable:$true] %s601
          %607 = dma.vmem_to_hbm [thread:$0]  %s602, 512, %s600, %s585, 256, 512, 16
        $region86: #{forward.3} parent=73 // pred_fallthru
          _
      $region74: #{forward.3} parent=5 // pred_fallthru
        _
      %p608 = scmp.le.s32.totalorder 2, %s14
      // Predicated region
      $region87: #{forward.3} parent=5 // pred_check
        %p609 = pneg %p608
      $region88: #{forward.3} parent=5 // pred_check_branch
        %611 = sbr.rel (%p609) target = $region90
      $region89: #{forward.3} parent=5 // pred_region
        %s612 = ssub.s32 %s14, 2
        // Predicated region
        $region91: #{forward.3} parent=89 // pred_check
          %p613 = pneg %p177
        $region92: #{forward.3} parent=89 // pred_check_branch
          %615 = sbr.rel (%p613) target = $region94
        $region93: #{forward.3} parent=89 // pred_region
          %s616 = sand.u32 %s162, 1
          %s617 = scalar_lea.sflag [#allocation5], %s616
          %s618 = sand.u32 %s162, 1
          %s619 = smul.addr %s618, 32
          %s620 = scalar_lea.vmem [#allocation4], %s619
          %621 = dma.done %s617, 512
        $region94: #{forward.3} parent=89 // pred_fallthru
          _
      $region90: #{forward.3} parent=5 // pred_fallthru
        _
    $region6: #{forward.3} parent=1 // loop_footer
      %s18 = sadd.s32 1, %s14
    $region7: #{forward.3} parent=1 // loop_footer_branch
      %13 = sbr.rel target = $region3
    $region8: #{forward.3} parent=1 // loop_exit
      _
    %622 = vsyncpa [#allocation5], 1
    %s623 = scalar_lea.sflag [#allocation5], 1
    %624 = vsyncpa %s623, 1

// kernel: forward.2
$region0: #{forward.2}
  #allocation0 [shape = 'u32[]', space=smem, size = 0x4, offset = 0x4, fixed_abs, tag = 'smem constant byte address 0x4 - core index']
  #allocation1 [shape = 'u32[144,128]{1,0:T(1,128)}', space=vmem, size = 0x12000, scoped, tag = 'internal scratch']
  #allocation2 [shape = 'f32[16,128]{1,0:T(8,128)}', space=vmem, size = 0x2000, scoped, tag = 'scratch operand']
  #allocation3 [shape = 'bf16[16,128]{1,0:T(16,128)(2,1)}', space=vmem, size = 0x1000, scoped, tag = 'scratch operand']
  #allocation4 [shape = 'f32[16,128]{1,0:T(8,128)}', space=vmem, size = 0x2000, scoped, tag = 'scratch operand']
  %s0 = inlined_call_operand.vmem [shape: bf16[16,128], index: 0, kind: input, shape index: {}]
  %s1 = inlined_call_operand.vmem [shape: f32[2,1,128], index: 1, kind: input, shape index: {}]
  %s2 = inlined_call_operand.vmem [shape: f32[2,1,128], index: 2, kind: input, shape index: {}]
  %s3 = inlined_call_operand.hbm [shape: bf16[2,128,512], index: 3, kind: input, shape index: {}]
  %s4 = inlined_call_operand.vmem [shape: f32[2,1,512], index: 4, kind: input, shape index: {}]
  %s5 = inlined_call_operand.hbm [shape: bf16[2,512,128], index: 5, kind: input, shape index: {}]
  %s6 = inlined_call_operand.vmem [shape: f32[2,1,128], index: 6, kind: input, shape index: {}]
  %s7 = inlined_call_operand.vmem [shape: bf16[16,128], index: 7, kind: output, shape index: {}]
  %s8 = sld [smem:[#allocation0]]
  $region85: #{forward.2} parent=0
    _
  %s10 = ssub.s32 1, %s8
  %s11 = scalar_select 0, %s10, %s8
  $region1: #{forward.2} parent=0
    #allocation5 [shape = 'u8[131072]{0}', space=vmem, size = 0x20000, scoped, tag = 'input window, operand 3']
    #allocation6 [shape = 's32[2]{0}', space=sflag, size = 0x8, scoped, tag = 'scoped memory for forward.2']
    #allocation7 [shape = 'u8[131072]{0}', space=vmem, size = 0x20000, scoped, tag = 'input window, operand 5']
    #allocation8 [shape = 's32[2]{0}', space=sflag, size = 0x8, scoped, tag = 'scoped memory for forward.2']
    %12 = vsyncpa [#allocation6], 0
    %s13 = scalar_lea.sflag [#allocation6], 1
    %14 = vsyncpa %s13, 0
    %15 = vsyncpa [#allocation8], 0
    %s16 = scalar_lea.sflag [#allocation8], 1
    %17 = vsyncpa %s16, 0
    loop: start=0, step=1, limit=6
    $region2: #{forward.2} parent=1 // loop_pre_header
      _
    $region3: #{forward.2} parent=1 // loop_header
      %s19 = sphi 0, %s23
      %p20 = scmp.ge.s32.totalorder %s19, 6
      %s26 = sphi 0, %s45
      %s27 = sphi 0, %s41
      %s28 = sphi 0, %s37
      %s29 = sphi 0, %s26
      %s30 = sphi 0, %s27
      %s31 = sphi 0, %s28
      %s32 = sphi 0, %s29
      %s33 = sphi 0, %s30
      %s34 = sphi 0, %s31
      %s48 = sphi 0, %s50
      %s51 = sphi 0, %s48
      %s52 = sphi 0, %s51
      %s68 = sphi 0, %s52
      %s74 = sphi 0, %s76
      %s77 = sphi 0, %s74
      %s78 = sphi 0, %s77
      %s94 = sphi 0, %s78
      %s100 = sphi 0, %s102
      %s103 = sphi 0, %s100
      %s104 = sphi 0, %s103
      %s120 = sphi 0, %s104
      %s128 = sphi 0, %s130
      %s131 = sphi 0, %s128
      %s132 = sphi 0, %s131
      %s148 = sphi 0, %s132
      %s156 = sphi 0, %s158
      %s159 = sphi 0, %s156
      %s160 = sphi 0, %s159
      %s176 = sphi 0, %s160
      %s184 = sphi 0, %s186
      %s187 = sphi 0, %s184
      %s188 = sphi 0, %s187
      %s204 = sphi 0, %s188
      %s210 = sphi 0, %s212
      %s213 = sphi 0, %s210
      %s214 = sphi 0, %s213
      %s230 = sphi 0, %s214
      %s236 = sphi 0, %s238
      %s239 = sphi 0, %s236
      %s240 = sphi 0, %s239
      %s256 = sphi 0, %s240
    $region4: #{forward.2} parent=1 // loop_header_branch
      %22 = sbr.rel (%p20) target = $region8
    $region5: #{forward.2} parent=1 // loop_body
      %s24 = ssub.s32 %s19, 1
      %s25 = ssub.s32 %s19, 2
      %s35 = sadd.s32 1, %s28
      %p36 = scmp.ge.s32.totalorder %s35, 2
      %s37 = scalar_select %p36, 0, %s35
      %s38 = sadd.s32 1, %s27
      %s39 = scalar_select %p36, %s38, %s27
      %p40 = scmp.ge.s32.totalorder %s39, 2
      %s41 = scalar_select %p40, 0, %s39
      %s42 = sadd.s32 1, %s26
      %s43 = scalar_select %p40, %s42, %s26
      %p44 = scmp.ge.s32.totalorder %s43, 1
      %s45 = scalar_select %p44, 0, %s43
      %s46 = ssub.s32 %s26, %s45
      %p47 = scmp.eq.s32.totalorder %s46, 0
      %s49 = sadd.s32 %s48, 1
      %s50 = scalar_select %p47, %s48, %s49
      %p53 = pneg %p47
      %p54 = scmp.eq.s32.totalorder %s19, 3
      %p55 = por %p53, %p54
      %p56 = scmp.ne.s32.totalorder %s48, %s51
      %p57 = scmp.eq.s32.totalorder %s19, 0
      %p58 = por %p56, %p57
      %p59 = scmp.ne.s32.totalorder %s48, %s51
      %p60 = scmp.eq.s32.totalorder %s24, 3
      %p61 = por %p59, %p60
      %p62 = scmp.ne.s32.totalorder %s51, %s52
      %p63 = scmp.eq.s32.totalorder %s24, 0
      %p64 = por %p62, %p63
      %p65 = scmp.ne.s32.totalorder %s51, %s52
      %p66 = scmp.eq.s32.totalorder %s25, 3
      %p67 = por %p65, %p66
      %p69 = scmp.ne.s32.totalorder %s52, %s68
      %p70 = scmp.eq.s32.totalorder %s25, 0
      %p71 = por %p69, %p70
      %s72 = ssub.s32 %s27, %s41
      %p73 = scmp.eq.s32.totalorder %s72, 0
      %s75 = sadd.s32 %s74, 1
      %s76 = scalar_select %p73, %s74, %s75
      %p79 = pneg %p73
      %p80 = scmp.eq.s32.totalorder %s19, 3
      %p81 = por %p79, %p80
      %p82 = scmp.ne.s32.totalorder %s74, %s77
      %p83 = scmp.eq.s32.totalorder %s19, 0
      %p84 = por %p82, %p83
      %p85 = scmp.ne.s32.totalorder %s74, %s77
      %p86 = scmp.eq.s32.totalorder %s24, 3
      %p87 = por %p85, %p86
      %p88 = scmp.ne.s32.totalorder %s77, %s78
      %p89 = scmp.eq.s32.totalorder %s24, 0
      %p90 = por %p88, %p89
      %p91 = scmp.ne.s32.totalorder %s77, %s78
      %p92 = scmp.eq.s32.totalorder %s25, 3
      %p93 = por %p91, %p92
      %p95 = scmp.ne.s32.totalorder %s78, %s94
      %p96 = scmp.eq.s32.totalorder %s25, 0
      %p97 = por %p95, %p96
      %s98 = ssub.s32 %s27, %s41
      %p99 = scmp.eq.s32.totalorder %s98, 0
      %s101 = sadd.s32 %s100, 1
      %s102 = scalar_select %p99, %s100, %s101
      %p105 = pneg %p99
      %p106 = scmp.eq.s32.totalorder %s19, 3
      %p107 = por %p105, %p106
      %p108 = scmp.ne.s32.totalorder %s100, %s103
      %p109 = scmp.eq.s32.totalorder %s19, 0
      %p110 = por %p108, %p109
      %p111 = scmp.ne.s32.totalorder %s100, %s103
      %p112 = scmp.eq.s32.totalorder %s24, 3
      %p113 = por %p111, %p112
      %p114 = scmp.ne.s32.totalorder %s103, %s104
      %p115 = scmp.eq.s32.totalorder %s24, 0
      %p116 = por %p114, %p115
      %p117 = scmp.ne.s32.totalorder %s103, %s104
      %p118 = scmp.eq.s32.totalorder %s25, 3
      %p119 = por %p117, %p118
      %p121 = scmp.ne.s32.totalorder %s104, %s120
      %p122 = scmp.eq.s32.totalorder %s25, 0
      %p123 = por %p121, %p122
      %s124 = ssub.s32 %s27, %s41
      %s125 = ssub.s32 %s28, %s37
      %s126 = sor.u32 %s124, %s125
      %p127 = scmp.eq.s32.totalorder %s126, 0
      %s129 = sadd.s32 %s128, 1
      %s130 = scalar_select %p127, %s128, %s129
      %p133 = pneg %p127
      %p134 = scmp.eq.s32.totalorder %s19, 3
      %p135 = por %p133, %p134
      %p136 = scmp.ne.s32.totalorder %s128, %s131
      %p137 = scmp.eq.s32.totalorder %s19, 0
      %p138 = por %p136, %p137
      %p139 = scmp.ne.s32.totalorder %s128, %s131
      %p140 = scmp.eq.s32.totalorder %s24, 3
      %p141 = por %p139, %p140
      %p142 = scmp.ne.s32.totalorder %s131, %s132
      %p143 = scmp.eq.s32.totalorder %s24, 0
      %p144 = por %p142, %p143
      %p145 = scmp.ne.s32.totalorder %s131, %s132
      %p146 = scmp.eq.s32.totalorder %s25, 3
      %p147 = por %p145, %p146
      %p149 = scmp.ne.s32.totalorder %s132, %s148
      %p150 = scmp.eq.s32.totalorder %s25, 0
      %p151 = por %p149, %p150
      %s152 = ssub.s32 %s27, %s41
      %s153 = ssub.s32 %s28, %s37
      %s154 = sor.u32 %s152, %s153
      %p155 = scmp.eq.s32.totalorder %s154, 0
      %s157 = sadd.s32 %s156, 1
      %s158 = scalar_select %p155, %s156, %s157
      %p161 = pneg %p155
      %p162 = scmp.eq.s32.totalorder %s19, 3
      %p163 = por %p161, %p162
      %p164 = scmp.ne.s32.totalorder %s156, %s159
      %p165 = scmp.eq.s32.totalorder %s19, 0
      %p166 = por %p164, %p165
      %p167 = scmp.ne.s32.totalorder %s156, %s159
      %p168 = scmp.eq.s32.totalorder %s24, 3
      %p169 = por %p167, %p168
      %p170 = scmp.ne.s32.totalorder %s159, %s160
      %p171 = scmp.eq.s32.totalorder %s24, 0
      %p172 = por %p170, %p171
      %p173 = scmp.ne.s32.totalorder %s159, %s160
      %p174 = scmp.eq.s32.totalorder %s25, 3
      %p175 = por %p173, %p174
      %p177 = scmp.ne.s32.totalorder %s160, %s176
      %p178 = scmp.eq.s32.totalorder %s25, 0
      %p179 = por %p177, %p178
      %s180 = ssub.s32 %s27, %s41
      %s181 = ssub.s32 %s28, %s37
      %s182 = sor.u32 %s180, %s181
      %p183 = scmp.eq.s32.totalorder %s182, 0
      %s185 = sadd.s32 %s184, 1
      %s186 = scalar_select %p183, %s184, %s185
      %p189 = pneg %p183
      %p190 = scmp.eq.s32.totalorder %s19, 3
      %p191 = por %p189, %p190
      %p192 = scmp.ne.s32.totalorder %s184, %s187
      %p193 = scmp.eq.s32.totalorder %s19, 0
      %p194 = por %p192, %p193
      %p195 = scmp.ne.s32.totalorder %s184, %s187
      %p196 = scmp.eq.s32.totalorder %s24, 3
      %p197 = por %p195, %p196
      %p198 = scmp.ne.s32.totalorder %s187, %s188
      %p199 = scmp.eq.s32.totalorder %s24, 0
      %p200 = por %p198, %p199
      %p201 = scmp.ne.s32.totalorder %s187, %s188
      %p202 = scmp.eq.s32.totalorder %s25, 3
      %p203 = por %p201, %p202
      %p205 = scmp.ne.s32.totalorder %s188, %s204
      %p206 = scmp.eq.s32.totalorder %s25, 0
      %p207 = por %p205, %p206
      %s208 = ssub.s32 %s27, %s41
      %p209 = scmp.eq.s32.totalorder %s208, 0
      %s211 = sadd.s32 %s210, 1
      %s212 = scalar_select %p209, %s210, %s211
      %p215 = pneg %p209
      %p216 = scmp.eq.s32.totalorder %s19, 3
      %p217 = por %p215, %p216
      %p218 = scmp.ne.s32.totalorder %s210, %s213
      %p219 = scmp.eq.s32.totalorder %s19, 0
      %p220 = por %p218, %p219
      %p221 = scmp.ne.s32.totalorder %s210, %s213
      %p222 = scmp.eq.s32.totalorder %s24, 3
      %p223 = por %p221, %p222
      %p224 = scmp.ne.s32.totalorder %s213, %s214
      %p225 = scmp.eq.s32.totalorder %s24, 0
      %p226 = por %p224, %p225
      %p227 = scmp.ne.s32.totalorder %s213, %s214
      %p228 = scmp.eq.s32.totalorder %s25, 3
      %p229 = por %p227, %p228
      %p231 = scmp.ne.s32.totalorder %s214, %s230
      %p232 = scmp.eq.s32.totalorder %s25, 0
      %p233 = por %p231, %p232
      %s234 = ssub.s32 %s26, %s45
      %p235 = scmp.eq.s32.totalorder %s234, 0
      %s237 = sadd.s32 %s236, 1
      %s238 = scalar_select %p235, %s236, %s237
      %p241 = pneg %p235
      %p242 = scmp.eq.s32.totalorder %s19, 3
      %p243 = por %p241, %p242
      %p244 = scmp.ne.s32.totalorder %s236, %s239
      %p245 = scmp.eq.s32.totalorder %s19, 0
      %p246 = por %p244, %p245
      %p247 = scmp.ne.s32.totalorder %s236, %s239
      %p248 = scmp.eq.s32.totalorder %s24, 3
      %p249 = por %p247, %p248
      %p250 = scmp.ne.s32.totalorder %s239, %s240
      %p251 = scmp.eq.s32.totalorder %s24, 0
      %p252 = por %p250, %p251
      %p253 = scmp.ne.s32.totalorder %s239, %s240
      %p254 = scmp.eq.s32.totalorder %s25, 3
      %p255 = por %p253, %p254
      %p257 = scmp.ne.s32.totalorder %s240, %s256
      %p258 = scmp.eq.s32.totalorder %s25, 0
      %p259 = por %p257, %p258
      %p260 = scmp.le.s32.totalorder 1, %s19
      %p261 = scmp.lt.s32.totalorder %s19, 5
      %p262 = pnand %p260, %p261
      %p263 = pneg %p262
      // Predicated region
      $region9: #{forward.2} parent=5 // pred_check
        _
      $region10: #{forward.2} parent=5 // pred_check_branch
        %265 = sbr.rel (%p262) target = $region12
      $region11: #{forward.2} parent=5 // pred_region
        %s266 = ssub.s32 %s19, 1
        // Predicated region
        $region13: #{forward.2} parent=11 // pred_check
          %p267 = pneg %p64
        $region14: #{forward.2} parent=11 // pred_check_branch
          %269 = sbr.rel (%p267) target = $region16
        $region15: #{forward.2} parent=11 // pred_region
          %s270 = smul.u32 2, %s29
          %p271 = scmp.lt.s32.totalorder %s270, 1
          %s272 = scalar_select %p271, %s270, 1
          %s273 = smul.addr %s272, 4
          %s274 = scalar_lea.vmem %s0, %s273
          %s275 = smul.u32 2, %s29
        $region16: #{forward.2} parent=11 // pred_fallthru
          _
      $region12: #{forward.2} parent=5 // pred_fallthru
        _
      %p276 = scmp.lt.s32.totalorder %s19, 4
      // Predicated region
      $region17: #{forward.2} parent=5 // pred_check
        %p277 = pneg %p276
      $region18: #{forward.2} parent=5 // pred_check_branch
        %279 = sbr.rel (%p277) target = $region20
      $region19: #{forward.2} parent=5 // pred_region
        // Predicated region
        $region21: #{forward.2} parent=19 // pred_check
          %p280 = pneg %p84
        $region22: #{forward.2} parent=19 // pred_check_branch
          %282 = sbr.rel (%p280) target = $region24
        $region23: #{forward.2} parent=19 // pred_region
          %p283 = scmp.lt.s32.totalorder %s27, 1
          %s284 = scalar_select %p283, %s27, 1
          %s285 = scalar_lea.vmem %s1, %s284
        $region24: #{forward.2} parent=19 // pred_fallthru
          _
        // Predicated region
        $region25: #{forward.2} parent=19 // pred_check
          %p286 = pneg %p110
        $region26: #{forward.2} parent=19 // pred_check_branch
          %288 = sbr.rel (%p286) target = $region28
        $region27: #{forward.2} parent=19 // pred_region
          %p289 = scmp.lt.s32.totalorder %s27, 1
          %s290 = scalar_select %p289, %s27, 1
          %s291 = scalar_lea.vmem %s2, %s290
        $region28: #{forward.2} parent=19 // pred_fallthru
          _
        // Predicated region
        $region29: #{forward.2} parent=19 // pred_check
          %p292 = pneg %p138
        $region30: #{forward.2} parent=19 // pred_check_branch
          %294 = sbr.rel (%p292) target = $region32
        $region31: #{forward.2} parent=19 // pred_region
          %s295 = sand.u32 %s128, 1
          %s296 = scalar_lea.sflag [#allocation6], %s295
          %s297 = sand.u32 %s128, 1
          %s298 = smul.addr %s297, 128
          %s299 = scalar_lea.vmem [#allocation5], %s298
          %s300 = smul.u32 2, %s28
          %s302 = ssub.s32 2048, 2048
          %303 = vsyncadd %s296, %s302
          %s304 = smul.addr %s27, 64
          %s305 = sadd.s32 %s300, %s304
          %s306 = smul.addr %s305, 64
          %s307 = scalar_lea.hbm %s3, %s306
          %s308 = sshll.u32 %s299, 4
          %s309 = int_to_ptr.vmem [resolvable:$true] %s308
          %314 = dma.hbm_to_vmem [thread:$0]  %s307, 2048, %s309, %s296, 256, 128, 8
        $region32: #{forward.2} parent=19 // pred_fallthru
          _
        // Predicated region
        $region33: #{forward.2} parent=19 // pred_check
          %p315 = pneg %p166
        $region34: #{forward.2} parent=19 // pred_check_branch
          %317 = sbr.rel (%p315) target = $region36
        $region35: #{forward.2} parent=19 // pred_region
          %s318 = smul.u32 2, %s28
          %p319 = scmp.lt.s32.totalorder %s27, 1
          %s320 = scalar_select %p319, %s27, 1
          %p321 = scmp.lt.s32.totalorder %s318, 3
          %s322 = scalar_select %p321, %s318, 3
          %s323 = smul.addr %s320, 4
          %s324 = sadd.s32 %s322, %s323
          %s325 = scalar_lea.vmem %s4, %s324
          %s326 = smul.u32 2, %s28
        $region36: #{forward.2} parent=19 // pred_fallthru
          _
        // Predicated region
        $region37: #{forward.2} parent=19 // pred_check
          %p327 = pneg %p194
        $region38: #{forward.2} parent=19 // pred_check_branch
          %329 = sbr.rel (%p327) target = $region40
        $region39: #{forward.2} parent=19 // pred_region
          %s330 = sand.u32 %s184, 1
          %s331 = scalar_lea.sflag [#allocation8], %s330
          %s332 = sand.u32 %s184, 1
          %s333 = smul.addr %s332, 128
          %s334 = scalar_lea.vmem [#allocation7], %s333
          %s335 = smul.u32 32, %s28
          %s337 = ssub.s32 2048, 2048
          %338 = vsyncadd %s331, %s337
          %s339 = smul.addr %s27, 64
          %s340 = sadd.s32 %s335, %s339
          %s341 = smul.addr %s340, 64
          %s342 = scalar_lea.hbm %s5, %s341
          %s343 = sshll.u32 %s334, 4
          %s344 = int_to_ptr.vmem [resolvable:$true] %s343
          %349 = dma.hbm_to_vmem [thread:$0]  %s342, 2048, %s344, %s331, 64, 64, 4
        $region40: #{forward.2} parent=19 // pred_fallthru
          _
        // Predicated region
        $region41: #{forward.2} parent=19 // pred_check
          %p350 = pneg %p220
        $region42: #{forward.2} parent=19 // pred_check_branch
          %352 = sbr.rel (%p350) target = $region44
        $region43: #{forward.2} parent=19 // pred_region
          %p353 = scmp.lt.s32.totalorder %s27, 1
          %s354 = scalar_select %p353, %s27, 1
          %s355 = scalar_lea.vmem %s6, %s354
        $region44: #{forward.2} parent=19 // pred_fallthru
          _
      $region20: #{forward.2} parent=5 // pred_fallthru
        _
      %p356 = scmp.le.s32.totalorder 1, %s19
      %p357 = scmp.lt.s32.totalorder %s19, 5
      %p358 = pnand %p356, %p357
      %p359 = pneg %p358
      // Predicated region
      $region45: #{forward.2} parent=5 // pred_check
        _
      $region46: #{forward.2} parent=5 // pred_check_branch
        %361 = sbr.rel (%p358) target = $region48
      $region47: #{forward.2} parent=5 // pred_region
        %s362 = ssub.s32 %s19, 1
        %s363 = sand.u32 %s131, 1
        %s364 = scalar_lea.sflag [#allocation6], %s363
        %s365 = sand.u32 %s131, 1
        %s366 = smul.addr %s365, 128
        %s367 = scalar_lea.vmem [#allocation5], %s366
        // Predicated region
        $region49: #{forward.2} parent=47 // pred_check
          %p368 = pneg %p144
        $region50: #{forward.2} parent=47 // pred_check_branch
          %370 = sbr.rel (%p368) target = $region52
        $region51: #{forward.2} parent=47 // pred_region
          %371 = dma.done %s364, 2048
        $region52: #{forward.2} parent=47 // pred_fallthru
          _
        %s372 = sand.u32 %s187, 1
        %s373 = scalar_lea.sflag [#allocation8], %s372
        %s374 = sand.u32 %s187, 1
        %s375 = smul.addr %s374, 128
        %s376 = scalar_lea.vmem [#allocation7], %s375
        // Predicated region
        $region53: #{forward.2} parent=47 // pred_check
          %p377 = pneg %p200
        $region54: #{forward.2} parent=47 // pred_check_branch
          %379 = sbr.rel (%p377) target = $region56
        $region55: #{forward.2} parent=47 // pred_region
          %380 = dma.done %s373, 2048
        $region56: #{forward.2} parent=47 // pred_fallthru
          _
        %s381 = smul.u32 2, %s29
        %p382 = scmp.lt.s32.totalorder %s381, 1
        %s383 = scalar_select %p382, %s381, 1
        %s384 = smul.addr %s383, 4
        %s385 = scalar_lea.vmem %s0, %s384
        %p386 = pneg %p64
        %p387 = pneg %p61
        %p388 = scmp.lt.s32.totalorder %s30, 1
        %s389 = scalar_select %p388, %s30, 1
        %s390 = scalar_lea.vmem %s1, %s389
        %p391 = pneg %p90
        %p392 = pneg %p87
        %p393 = scmp.lt.s32.totalorder %s30, 1
        %s394 = scalar_select %p393, %s30, 1
        %s395 = scalar_lea.vmem %s2, %s394
        %p396 = pneg %p116
        %p397 = pneg %p113
        %s398 = sand.u32 %s131, 1
        %s399 = scalar_lea.sflag [#allocation6], %s398
        %s400 = sand.u32 %s131, 1
        %s401 = smul.addr %s400, 128
        %s402 = scalar_lea.vmem [#allocation5], %s401
        %p403 = pneg %p144
        %p404 = pneg %p141
        %s405 = smul.u32 2, %s31
        %p406 = scmp.lt.s32.totalorder %s30, 1
        %s407 = scalar_select %p406, %s30, 1
        %p408 = scmp.lt.s32.totalorder %s405, 3
        %s409 = scalar_select %p408, %s405, 3
        %s410 = smul.addr %s407, 4
        %s411 = sadd.s32 %s409, %s410
        %s412 = scalar_lea.vmem %s4, %s411
        %p413 = pneg %p172
        %p414 = pneg %p169
        %s415 = sand.u32 %s187, 1
        %s416 = scalar_lea.sflag [#allocation8], %s415
        %s417 = sand.u32 %s187, 1
        %s418 = smul.addr %s417, 128
        %s419 = scalar_lea.vmem [#allocation7], %s418
        %p420 = pneg %p200
        %p421 = pneg %p197
        %p422 = scmp.lt.s32.totalorder %s30, 1
        %s423 = scalar_select %p422, %s30, 1
        %s424 = scalar_lea.vmem %s6, %s423
        %p425 = pneg %p226
        %p426 = pneg %p223
        %p427 = pneg %p252
        %p428 = pneg %p249
        %s429 = smul.u32 2, %s29
        %p430 = scmp.lt.s32.totalorder %s429, 1
        %s431 = scalar_select %p430, %s429, 1
        %s432 = smul.addr %s431, 4
        %s433 = scalar_lea.vmem %s7, %s432
        %s434 = smul.u32 2, %s29
        %p435 = scmp.lt.s32.totalorder %s434, 1
        %s436 = scalar_select %p435, %s434, 1
        %s437 = smul.addr %s436, 4
        %s438 = scalar_lea.vmem %s0, %s437
        %s439 = smul.u32 2, %s29
        %p440 = scmp.lt.s32.totalorder %s30, 1
        %s441 = scalar_select %p440, %s30, 1
        %s442 = scalar_lea.vmem %s1, %s441
        %p443 = scmp.lt.s32.totalorder %s30, 1
        %s444 = scalar_select %p443, %s30, 1
        %s445 = scalar_lea.vmem %s2, %s444
        %s446 = smul.u32 2, %s31
        %s447 = smul.u32 2, %s31
        %p448 = scmp.lt.s32.totalorder %s30, 1
        %s449 = scalar_select %p448, %s30, 1
        %p450 = scmp.lt.s32.totalorder %s447, 3
        %s451 = scalar_select %p450, %s447, 3
        %s452 = smul.addr %s449, 4
        %s453 = sadd.s32 %s451, %s452
        %s454 = scalar_lea.vmem %s4, %s453
        %s455 = smul.u32 2, %s31
        %s456 = smul.u32 32, %s31
        %p457 = scmp.lt.s32.totalorder %s30, 1
        %s458 = scalar_select %p457, %s30, 1
        %s459 = scalar_lea.vmem %s6, %s458
        %s460 = smul.u32 2, %s29
        %p461 = scmp.lt.s32.totalorder %s460, 1
        %s462 = scalar_select %p461, %s460, 1
        %s463 = smul.addr %s462, 4
        %s464 = scalar_lea.vmem %s7, %s463
        %s465 = smul.u32 2, %s29
        %p467 = scmp.eq.s32.totalorder %s30, 0
        %p468 = scmp.eq.s32.totalorder %s31, 0
        %p469 = pnand %p467, %p468
        %p470 = pneg %p469
        // Predicated region
        $region57: #{forward.2} parent=47 // pred_check
          _
        $region58: #{forward.2} parent=47 // pred_check_branch
          %472 = sbr.rel (%p469) target = $region60
        $region59: #{forward.2} parent=47 // pred_region
          %v473 = vld [vmem:[%s438] sm:$0xf]
          %v474 = vld [vmem:[%s438 + $0x4] sm:$0xf]
          %v475 = vunpack.c.l.bf16 %v473
          %v476 = vunpack.c.l.bf16 %v474
          %477 = vst [vmem:[#allocation2] sm:$0xff] %v475
          %478 = vst [vmem:[#allocation2 + $0x8] sm:$0xff] %v476
        $region60: #{forward.2} parent=47 // pred_fallthru
          _
        // Predicated region
        $region61: #{forward.2} parent=47 // pred_check
          %p479 = pneg %p468
        $region62: #{forward.2} parent=47 // pred_check_branch
          %481 = sbr.rel (%p479) target = $region64
        $region63: #{forward.2} parent=47 // pred_region
          %v482 = vld [vmem:[#allocation2] sm:$0xff]
          %v483 = vld [vmem:[#allocation2 + $0x8] sm:$0xff]
          %v484 = vld [vmem:[%s442] sm:$0x1]
          %v485 = vld [vmem:[%s445] sm:$0x1]
          %486 = vadd.xlane.f32.xlu0 %v482
          %v487 = vpop.xlane.xlu0 %486
          %488 = vadd.xlane.f32.xlu0 %v483
          %v489 = vpop.xlane.xlu0 %488
          %v490 = vrcp.pop 128.0
          %v491 = vmul.f32 %v487, %v490
          %v492 = vmul.f32 %v489, %v490
          %v493 = vsub.f32 %v482, %v491
          %v494 = vsub.f32 %v483, %v492
          %v495 = vmul.f32 %v493, %v493
          %v496 = vmul.f32 %v494, %v494
          %497 = vadd.xlane.f32.xlu0 %v495
          %v498 = vpop.xlane.xlu0 %497
          %499 = vadd.xlane.f32.xlu0 %v496
          %v500 = vpop.xlane.xlu0 %499
          %v501 = vmul.f32 %v498, %v490
          %v502 = vmul.f32 %v500, %v490
          %v503 = vadd.f32 %v501, 1e-05
          %v504 = vadd.f32 %v502, 1e-05
          %v505 = vrsqrt.pop %v503
          %v506 = vrsqrt.pop %v504
          %v507 = vmul.f32 %v493, %v505
          %v508 = vmul.f32 %v494, %v506
          %v510 = vlaneseq
          %v511 = vshrl.u32 %v510, 7
          %v512 = vsub.s32 0, %v511
          %v513 = vrot.slane %v484, %v512
          %v515 = vmul.f32 %v507, %v513
          %v516 = vmul.f32 %v508, %v513
          %v518 = vlaneseq
          %v519 = vshrl.u32 %v518, 7
          %v520 = vsub.s32 0, %v519
          %v521 = vrot.slane %v485, %v520
          %v523 = vadd.f32 %v515, %v521
          %v524 = vadd.f32 %v516, %v521
          %v525 = vpack.c.bf16 %v524, %v523
          %526 = vst [vmem:[#allocation3] sm:$0xff] %v525
          %527 = vst [vmem:[#allocation4] sm:$0xff] 0.0
          %528 = vst [vmem:[#allocation4 + $0x8] sm:$0xff] 0.0
        $region64: #{forward.2} parent=47 // pred_fallthru
          _
        %v529 = vld [vmem:[#allocation3] sm:$0xff]
        %v530 = vld [vmem:[%s367] sm:$0xff]
        %v531 = vld [vmem:[%s367 + $0x8] sm:$0xff]
        %v532 = vld [vmem:[%s367 + $0x10] sm:$0xff]
        %v533 = vld [vmem:[%s367 + $0x18] sm:$0xff]
        %v534 = vld [vmem:[%s367 + $0x20] sm:$0xff]
        %v535 = vld [vmem:[%s367 + $0x28] sm:$0xff]
        %v536 = vld [vmem:[%s367 + $0x30] sm:$0xff]
        %v537 = vld [vmem:[%s367 + $0x38] sm:$0xff]
        %v538 = vld [vmem:[%s367 + $0x40] sm:$0xff]
        %v539 = vld [vmem:[%s367 + $0x48] sm:$0xff]
        %v540 = vld [vmem:[%s367 + $0x50] sm:$0xff]
        %v541 = vld [vmem:[%s367 + $0x58] sm:$0xff]
        %v542 = vld [vmem:[%s367 + $0x60] sm:$0xff]
        %v543 = vld [vmem:[%s367 + $0x68] sm:$0xff]
        %v544 = vld [vmem:[%s367 + $0x70] sm:$0xff]
        %v545 = vld [vmem:[%s367 + $0x78] sm:$0xff]
        %v546 = vld [vmem:[%s454] sm:$0x3]
        %v548 = vlaneseq
        %v549 = vshrl.u32 %v548, 7
        %v550 = vsub.s32 0, %v549
        %v551 = vrot.slane %v546, %v550
        %v552 = vlaneseq
        %v553 = vshrl.u32 %v552, 7
        %v554 = vsub.s32 1, %v553
        %v555 = vrot.slane %v546, %v554
        %v574 = vunpack.c.l.b16 %v530
        %v575 = vunpack.c.h.b16 %v530
        %v576 = vunpack.c.l.b16 %v531
        %v577 = vunpack.c.h.b16 %v531
        %v578 = vunpack.c.l.b16 %v532
        %v579 = vunpack.c.h.b16 %v532
        %v580 = vunpack.c.l.b16 %v533
        %v581 = vunpack.c.h.b16 %v533
        %v582 = vunpack.c.l.b16 %v534
        %v583 = vunpack.c.h.b16 %v534
        %v584 = vunpack.c.l.b16 %v535
        %v585 = vunpack.c.h.b16 %v535
        %v586 = vunpack.c.l.b16 %v536
        %v587 = vunpack.c.h.b16 %v536
        %v588 = vunpack.c.l.b16 %v537
        %v589 = vunpack.c.h.b16 %v537
        %v590 = vunpack.c.l.b16 %v538
        %v591 = vunpack.c.h.b16 %v538
        %v592 = vunpack.c.l.b16 %v539
        %v593 = vunpack.c.h.b16 %v539
        %v594 = vunpack.c.l.b16 %v540
        %v595 = vunpack.c.h.b16 %v540
        %v596 = vunpack.c.l.b16 %v541
        %v597 = vunpack.c.h.b16 %v541
        %v598 = vunpack.c.l.b16 %v542
        %v599 = vunpack.c.h.b16 %v542
        %v600 = vunpack.c.l.b16 %v543
        %v601 = vunpack.c.h.b16 %v543
        %v602 = vunpack.c.l.b16 %v544
        %v603 = vunpack.c.h.b16 %v544
        %v604 = vunpack.c.l.b16 %v545
        %v605 = vunpack.c.h.b16 %v545
        %v606 = vpack.c.b16 %v576, %v574
        %v607 = vpack.c.b16 %v577, %v575
        %v608 = vpack.c.b16 %v580, %v578
        %v609 = vpack.c.b16 %v581, %v579
        %v610 = vpack.c.b16 %v584, %v582
        %v611 = vpack.c.b16 %v585, %v583
        %v612 = vpack.c.b16 %v588, %v586
        %v613 = vpack.c.b16 %v589, %v587
        %v614 = vpack.c.b16 %v592, %v590
        %v615 = vpack.c.b16 %v593, %v591
        %v616 = vpack.c.b16 %v596, %v594
        %v617 = vpack.c.b16 %v597, %v595
        %v618 = vpack.c.b16 %v600, %v598
        %v619 = vpack.c.b16 %v601, %v599
        %v620 = vpack.c.b16 %v604, %v602
        %v621 = vpack.c.b16 %v605, %v603
        %638 = vmatprep.subr.bf16.mxu0 %v607
        %639 = vmatpush1.bf16.msra.mxu0 %v606
        %640 = vmatprep.subr.bf16.mxu0 %v609
        %641 = vmatpush1.bf16.msra.mxu0 %v608
        %642 = vmatprep.subr.bf16.mxu0 %v611
        %643 = vmatpush1.bf16.msra.mxu0 %v610
        %644 = vmatprep.subr.bf16.mxu0 %v613
        %645 = vmatpush1.bf16.msra.mxu0 %v612
        %646 = vmatprep.subr.bf16.mxu0 %v615
        %647 = vmatpush1.bf16.msra.mxu0 %v614
        %648 = vmatprep.subr.bf16.mxu0 %v617
        %649 = vmatpush1.bf16.msra.mxu0 %v616
        %650 = vmatprep.subr.bf16.mxu0 %v619
        %651 = vmatpush1.bf16.msra.mxu0 %v618
        %652 = vmatprep.subr.bf16.mxu0 %v621
        %653 = vmatpush1.bf16.msra.mxu0 %v620
        %654 = vmatprep.subr.bf16.mxu0 0
        %655 = vmatpush1.bf16.msra.mxu0 0
        %656 = vmatprep.subr.bf16.mxu0 0
        %657 = vmatpush1.bf16.msra.mxu0 0
        %658 = vmatprep.subr.bf16.mxu0 0
        %659 = vmatpush1.bf16.msra.mxu0 0
        %660 = vmatprep.subr.bf16.mxu0 0
        %661 = vmatpush1.bf16.msra.mxu0 0
        %662 = vmatprep.subr.bf16.mxu0 0
        %663 = vmatpush1.bf16.msra.mxu0 0
        %664 = vmatprep.subr.bf16.mxu0 0
        %665 = vmatpush1.bf16.msra.mxu0 0
        %666 = vmatprep.subr.bf16.mxu0 0
        %667 = vmatpush1.bf16.msra.mxu0 0
        %668 = vmatprep.subr.bf16.mxu0 0
        %669 = vmatpush1.bf16.msra.mxu0 0
        %670 = vmatprep.mubr.bf16.mxu0 0
        %671 = vmatmul.mubr.bf16.gmra.mrb[0].mxu0 %v529
        %v672 = vpop.f32.mrb[0].mxu0
        %v673 = vadd.f32 %v551, %v672
        %v674 = vpop.f32.mrb[0].mxu0
        %v675 = vadd.f32 %v555, %v674
        %v676 = vpop.f32.mrb[0].mxu0
        %v677 = vadd.f32 %v551, %v676
        %v678 = vpop.f32.mrb[0].mxu0
        %v679 = vadd.f32 %v555, %v678
        %680 = vdwg.mxu0
        %v681 = vmul.f32 %v673, 0.5
        %v682 = vmul.f32 %v675, 0.5
        %v683 = vmul.f32 %v677, 0.5
        %v684 = vmul.f32 %v679, 0.5
        %v685 = vmul.f32 %v673, 0.70710677
        %v686 = vmul.f32 %v675, 0.70710677
        %v687 = vmul.f32 %v677, 0.70710677
        %v688 = vmul.f32 %v679, 0.70710677
        %vm689 = vcmp.ge.f32.partialorder %v685, 0.0
        %vm690 = vcmp.ge.f32.partialorder %v686, 0.0
        %vm691 = vcmp.ge.f32.partialorder %v687, 0.0
        %vm692 = vcmp.ge.f32.partialorder %v688, 0.0
        %v693 = vsel %vm689, 1.0, -1.0
        %v694 = vsel %vm690, 1.0, -1.0
        %v695 = vsel %vm691, 1.0, -1.0
        %v696 = vsel %vm692, 1.0, -1.0
        %v697 = vand.u32 2147483647, %v685
        %v698 = vand.u32 2147483647, %v686
        %v699 = vand.u32 2147483647, %v687
        %v700 = vand.u32 2147483647, %v688
        %v701 = vmul.f32 %v697, 0.3275911
        %v702 = vmul.f32 %v698, 0.3275911
        %v703 = vmul.f32 %v699, 0.3275911
        %v704 = vmul.f32 %v700, 0.3275911
        %v705 = vadd.f32 %v701, 1.0
        %v706 = vadd.f32 %v702, 1.0
        %v707 = vadd.f32 %v703, 1.0
        %v708 = vadd.f32 %v704, 1.0
        %v709 = vrcp.pop %v705
        %v710 = vmul.f32 1.0, %v709
        %v711 = vrcp.pop %v706
        %v712 = vmul.f32 1.0, %v711
        %v713 = vrcp.pop %v707
        %v714 = vmul.f32 1.0, %v713
        %v715 = vrcp.pop %v708
        %v716 = vmul.f32 1.0, %v715
        %v717 = vmul.f32 %v710, 1.0614054
        %v718 = vmul.f32 %v712, 1.0614054
        %v719 = vmul.f32 %v714, 1.0614054
        %v720 = vmul.f32 %v716, 1.0614054
        %v721 = vadd.f32 %v717, -1.4531521
        %v722 = vadd.f32 %v718, -1.4531521
        %v723 = vadd.f32 %v719, -1.4531521
        %v724 = vadd.f32 %v720, -1.4531521
        %v725 = vmul.f32 %v721, %v710
        %v726 = vmul.f32 %v722, %v712
        %v727 = vmul.f32 %v723, %v714
        %v728 = vmul.f32 %v724, %v716
        %v729 = vadd.f32 %v725, 1.4214138
        %v730 = vadd.f32 %v726, 1.4214138
        %v731 = vadd.f32 %v727, 1.4214138
        %v732 = vadd.f32 %v728, 1.4214138
        %v733 = vmul.f32 %v729, %v710
        %v734 = vmul.f32 %v730, %v712
        %v735 = vmul.f32 %v731, %v714
        %v736 = vmul.f32 %v732, %v716
        %v737 = vadd.f32 %v733, -0.28449672
        %v738 = vadd.f32 %v734, -0.28449672
        %v739 = vadd.f32 %v735, -0.28449672
        %v740 = vadd.f32 %v736, -0.28449672
        %v741 = vmul.f32 %v737, %v710
        %v742 = vmul.f32 %v738, %v712
        %v743 = vmul.f32 %v739, %v714
        %v744 = vmul.f32 %v740, %v716
        %v745 = vadd.f32 %v741, 0.2548296
        %v746 = vadd.f32 %v742, 0.2548296
        %v747 = vadd.f32 %v743, 0.2548296
        %v748 = vadd.f32 %v744, 0.2548296
        %v749 = vmul.f32 %v745, %v710
        %v750 = vmul.f32 %v746, %v712
        %v751 = vmul.f32 %v747, %v714
        %v752 = vmul.f32 %v748, %v716
        %v753 = vsub.f32 0.0, %v697
        %v754 = vsub.f32 0.0, %v698
        %v755 = vsub.f32 0.0, %v699
        %v756 = vsub.f32 0.0, %v700
        %v757 = vmul.f32 %v753, %v697
        %v758 = vmul.f32 %v754, %v698
        %v759 = vmul.f32 %v755, %v699
        %v760 = vmul.f32 %v756, %v700
        %v761 = vmul.f32 %v757, 1.442695
        %v762 = vpow.pop %v761
        %v763 = vmul.f32 %v758, 1.442695
        %v764 = vpow.pop %v763
        %v765 = vmul.f32 %v759, 1.442695
        %v766 = vpow.pop %v765
        %v767 = vmul.f32 %v760, 1.442695
        %v768 = vpow.pop %v767
        %v769 = vmul.f32 %v749, %v762
        %v770 = vmul.f32 %v750, %v764
        %v771 = vmul.f32 %v751, %v766
        %v772 = vmul.f32 %v752, %v768
        %v773 = vsub.f32 1.0, %v769
        %v774 = vsub.f32 1.0, %v770
        %v775 = vsub.f32 1.0, %v771
        %v776 = vsub.f32 1.0, %v772
        %v777 = vmul.f32 %v693, %v773
        %v778 = vmul.f32 %v694, %v774
        %v779 = vmul.f32 %v695, %v775
        %v780 = vmul.f32 %v696, %v776
        %v781 = vadd.f32 %v777, 1.0
        %v782 = vadd.f32 %v778, 1.0
        %v783 = vadd.f32 %v779, 1.0
        %v784 = vadd.f32 %v780, 1.0
        %v785 = vmul.f32 %v681, %v781
        %v786 = vmul.f32 %v682, %v782
        %v787 = vmul.f32 %v683, %v783
        %v788 = vmul.f32 %v684, %v784
        %v789 = vld [vmem:[#allocation4] sm:$0xff]
        %v790 = vld [vmem:[#allocation4 + $0x8] sm:$0xff]
        %v791 = vpack.c.bf16 %v787, %v785
        %v792 = vpack.c.bf16 %v788, %v786
        %v793 = vld [vmem:[%s376] sm:$0xf]
        %v794 = vld [vmem:[%s376 + $0x4] sm:$0xf]
        %v795 = vld [vmem:[%s376 + $0x8] sm:$0xf]
        %v796 = vld [vmem:[%s376 + $0xc] sm:$0xf]
        %v797 = vld [vmem:[%s376 + $0x10] sm:$0xf]
        %v798 = vld [vmem:[%s376 + $0x14] sm:$0xf]
        %v799 = vld [vmem:[%s376 + $0x18] sm:$0xf]
        %v800 = vld [vmem:[%s376 + $0x1c] sm:$0xf]
        %v801 = vld [vmem:[%s376 + $0x20] sm:$0xf]
        %v802 = vld [vmem:[%s376 + $0x24] sm:$0xf]
        %v803 = vld [vmem:[%s376 + $0x28] sm:$0xf]
        %v804 = vld [vmem:[%s376 + $0x2c] sm:$0xf]
        %v805 = vld [vmem:[%s376 + $0x30] sm:$0xf]
        %v806 = vld [vmem:[%s376 + $0x34] sm:$0xf]
        %v807 = vld [vmem:[%s376 + $0x38] sm:$0xf]
        %v808 = vld [vmem:[%s376 + $0x3c] sm:$0xf]
        %v809 = vld [vmem:[%s376 + $0x40] sm:$0xf]
        %v810 = vld [vmem:[%s376 + $0x44] sm:$0xf]
        %v811 = vld [vmem:[%s376 + $0x48] sm:$0xf]
        %v812 = vld [vmem:[%s376 + $0x4c] sm:$0xf]
        %v813 = vld [vmem:[%s376 + $0x50] sm:$0xf]
        %v814 = vld [vmem:[%s376 + $0x54] sm:$0xf]
        %v815 = vld [vmem:[%s376 + $0x58] sm:$0xf]
        %v816 = vld [vmem:[%s376 + $0x5c] sm:$0xf]
        %v817 = vld [vmem:[%s376 + $0x60] sm:$0xf]
        %v818 = vld [vmem:[%s376 + $0x64] sm:$0xf]
        %v819 = vld [vmem:[%s376 + $0x68] sm:$0xf]
        %v820 = vld [vmem:[%s376 + $0x6c] sm:$0xf]
        %v821 = vld [vmem:[%s376 + $0x70] sm:$0xf]
        %v822 = vld [vmem:[%s376 + $0x74] sm:$0xf]
        %v823 = vld [vmem:[%s376 + $0x78] sm:$0xf]
        %v824 = vld [vmem:[%s376 + $0x7c] sm:$0xf]
        %v857 = vunpack.c.l.b16 %v793
        %v858 = vunpack.c.l.b16 %v794
        %v859 = vunpack.c.l.b16 %v795
        %v860 = vunpack.c.l.b16 %v796
        %v861 = vunpack.c.l.b16 %v797
        %v862 = vunpack.c.l.b16 %v798
        %v863 = vunpack.c.l.b16 %v799
        %v864 = vunpack.c.l.b16 %v800
        %v865 = vunpack.c.l.b16 %v801
        %v866 = vunpack.c.l.b16 %v802
        %v867 = vunpack.c.l.b16 %v803
        %v868 = vunpack.c.l.b16 %v804
        %v869 = vunpack.c.l.b16 %v805
        %v870 = vunpack.c.l.b16 %v806
        %v871 = vunpack.c.l.b16 %v807
        %v872 = vunpack.c.l.b16 %v808
        %v873 = vunpack.c.l.b16 %v809
        %v874 = vunpack.c.l.b16 %v810
        %v875 = vunpack.c.l.b16 %v811
        %v876 = vunpack.c.l.b16 %v812
        %v877 = vunpack.c.l.b16 %v813
        %v878 = vunpack.c.l.b16 %v814
        %v879 = vunpack.c.l.b16 %v815
        %v880 = vunpack.c.l.b16 %v816
        %v881 = vunpack.c.l.b16 %v817
        %v882 = vunpack.c.l.b16 %v818
        %v883 = vunpack.c.l.b16 %v819
        %v884 = vunpack.c.l.b16 %v820
        %v885 = vunpack.c.l.b16 %v821
        %v886 = vunpack.c.l.b16 %v822
        %v887 = vunpack.c.l.b16 %v823
        %v888 = vunpack.c.l.b16 %v824
        %v889 = vpack.c.b16 %v858, %v857
        %v890 = vpack.c.b16 %v860, %v859
        %v891 = vpack.c.b16 %v862, %v861
        %v892 = vpack.c.b16 %v864, %v863
        %v893 = vpack.c.b16 %v866, %v865
        %v894 = vpack.c.b16 %v868, %v867
        %v895 = vpack.c.b16 %v870, %v869
        %v896 = vpack.c.b16 %v872, %v871
        %v897 = vpack.c.b16 %v874, %v873
        %v898 = vpack.c.b16 %v876, %v875
        %v899 = vpack.c.b16 %v878, %v877
        %v900 = vpack.c.b16 %v880, %v879
        %v901 = vpack.c.b16 %v882, %v881
        %v902 = vpack.c.b16 %v884, %v883
        %v903 = vpack.c.b16 %v886, %v885
        %v904 = vpack.c.b16 %v888, %v887
        %921 = vmatprep.subr.bf16.mxu0 0
        %922 = vmatpush1.bf16.msra.mxu0 %v889
        %923 = vmatprep.subr.bf16.mxu0 0
        %924 = vmatpush1.bf16.msra.mxu0 %v890
        %925 = vmatprep.subr.bf16.mxu0 0
        %926 = vmatpush1.bf16.msra.mxu0 %v891
        %927 = vmatprep.subr.bf16.mxu0 0
        %928 = vmatpush1.bf16.msra.mxu0 %v892
        %929 = vmatprep.subr.bf16.mxu0 0
        %930 = vmatpush1.bf16.msra.mxu0 %v893
        %931 = vmatprep.subr.bf16.mxu0 0
        %932 = vmatpush1.bf16.msra.mxu0 %v894
        %933 = vmatprep.subr.bf16.mxu0 0
        %934 = vmatpush1.bf16.msra.mxu0 %v895
        %935 = vmatprep.subr.bf16.mxu0 0
        %936 = vmatpush1.bf16.msra.mxu0 %v896
        %937 = vmatprep.subr.bf16.mxu0 0
        %938 = vmatpush1.bf16.msra.mxu0 %v897
        %939 = vmatprep.subr.bf16.mxu0 0
        %940 = vmatpush1.bf16.msra.mxu0 %v898
        %941 = vmatprep.subr.bf16.mxu0 0
        %942 = vmatpush1.bf16.msra.mxu0 %v899
        %943 = vmatprep.subr.bf16.mxu0 0
        %944 = vmatpush1.bf16.msra.mxu0 %v900
        %945 = vmatprep.subr.bf16.mxu0 0
        %946 = vmatpush1.bf16.msra.mxu0 %v901
        %947 = vmatprep.subr.bf16.mxu0 0
        %948 = vmatpush1.bf16.msra.mxu0 %v902
        %949 = vmatprep.subr.bf16.mxu0 0
        %950 = vmatpush1.bf16.msra.mxu0 %v903
        %951 = vmatprep.subr.bf16.mxu0 0
        %952 = vmatpush1.bf16.msra.mxu0 %v904
        %953 = vmatprep.mubr.bf16.mxu0 %v792
        %954 = vmatmul.mubr.bf16.gmra.mrb[0].mxu0 %v791
        %v955 = vpop.f32.mrb[0].mxu0
        %v956 = vadd.f32 0.0, %v955
        %v957 = vpop.f32.mrb[0].mxu0
        %v958 = vpop.f32.mrb[0].mxu0
        %v959 = vadd.f32 0.0, %v958
        %v960 = vpop.f32.mrb[0].mxu0
        %961 = vdwg.mxu0
        %v962 = vadd.f32 %v789, %v956
        %v963 = vadd.f32 %v790, %v959
        %964 = vst [vmem:[#allocation4] sm:$0xff] %v962
        %965 = vst [vmem:[#allocation4 + $0x8] sm:$0xff] %v963
        %p966 = scmp.eq.s32.totalorder %s31, 1
        // Predicated region
        $region65: #{forward.2} parent=47 // pred_check
          %p967 = pneg %p966
        $region66: #{forward.2} parent=47 // pred_check_branch
          %969 = sbr.rel (%p967) target = $region68
        $region67: #{forward.2} parent=47 // pred_region
          %v970 = vld [vmem:[#allocation2] sm:$0xff]
          %v971 = vld [vmem:[#allocation2 + $0x8] sm:$0xff]
          %v972 = vld [vmem:[#allocation4] sm:$0xff]
          %v973 = vld [vmem:[#allocation4 + $0x8] sm:$0xff]
          %v974 = vadd.f32 %v970, %v972
          %v975 = vadd.f32 %v971, %v973
          %v976 = vld [vmem:[%s459] sm:$0x1]
          %v978 = vlaneseq
          %v979 = vshrl.u32 %v978, 7
          %v980 = vsub.s32 0, %v979
          %v981 = vrot.slane %v976, %v980
          %v983 = vadd.f32 %v974, %v981
          %v984 = vadd.f32 %v975, %v981
          %985 = vst [vmem:[#allocation2] sm:$0xff] %v983
          %986 = vst [vmem:[#allocation2 + $0x8] sm:$0xff] %v984
        $region68: #{forward.2} parent=47 // pred_fallthru
          _
        %p987 = scmp.eq.s32.totalorder %s30, 1
        %p988 = pnand %p987, %p966
        %p989 = pneg %p988
        // Predicated region
        $region69: #{forward.2} parent=47 // pred_check
          _
        $region70: #{forward.2} parent=47 // pred_check_branch
          %991 = sbr.rel (%p988) target = $region72
        $region71: #{forward.2} parent=47 // pred_region
          %v992 = vld [vmem:[#allocation2] sm:$0xff]
          %v993 = vld [vmem:[#allocation2 + $0x8] sm:$0xff]
          %v994 = vpack.c.bf16 %v993, %v992
          %v996 = vunpack.c.l.b16 %v994
          %v997 = vunpack.c.h.b16 %v994
          %v998 = vpack.c.b16 %v996, %v996
          %v999 = vpack.c.b16 %v997, %v997
          %1002 = vst [vmem:[%s464] sm:$0xf] %v998
          %1003 = vst [vmem:[%s464 + $0x4] sm:$0xf] %v999
        $region72: #{forward.2} parent=47 // pred_fallthru
          _
        %s1004 = smul.u32 2, %s29
        %p1005 = scmp.lt.s32.totalorder %s1004, 1
        %s1006 = scalar_select %p1005, %s1004, 1
        %s1007 = smul.addr %s1006, 4
        %s1008 = scalar_lea.vmem %s7, %s1007
        // Predicated region
        $region73: #{forward.2} parent=47 // pred_check
          %p1009 = pneg %p249
        $region74: #{forward.2} parent=47 // pred_check_branch
          %1011 = sbr.rel (%p1009) target = $region76
        $region75: #{forward.2} parent=47 // pred_region
          %s1012 = smul.u32 2, %s29
        $region76: #{forward.2} parent=47 // pred_fallthru
          _
        // Predicated region
        $region77: #{forward.2} parent=47 // pred_check
          %p1013 = pneg %p249
        $region78: #{forward.2} parent=47 // pred_check_branch
          %1015 = sbr.rel (%p1013) target = $region80
        $region79: #{forward.2} parent=47 // pred_region
          %s1016 = smul.u32 2, %s29
          %p1017 = scmp.lt.s32.totalorder %s1016, 1
          %s1018 = scalar_select %p1017, %s1016, 1
          %s1019 = smul.addr %s1018, 4
          %s1020 = scalar_lea.vmem %s7, %s1019
        $region80: #{forward.2} parent=47 // pred_fallthru
          _
      $region48: #{forward.2} parent=5 // pred_fallthru
        _
      %p1021 = scmp.le.s32.totalorder 2, %s19
      // Predicated region
      $region81: #{forward.2} parent=5 // pred_check
        %p1022 = pneg %p1021
      $region82: #{forward.2} parent=5 // pred_check_branch
        %1024 = sbr.rel (%p1022) target = $region84
      $region83: #{forward.2} parent=5 // pred_region
        %s1025 = ssub.s32 %s19, 2
      $region84: #{forward.2} parent=5 // pred_fallthru
        _
    $region6: #{forward.2} parent=1 // loop_footer
      %s23 = sadd.s32 1, %s19
    $region7: #{forward.2} parent=1 // loop_footer_branch
      %18 = sbr.rel target = $region3
    $region8: #{forward.2} parent=1 // loop_exit
      _
    %1026 = vsyncpa [#allocation6], 1
    %s1027 = scalar_lea.sflag [#allocation6], 1
    %1028 = vsyncpa %s1027, 1
    %1029 = vsyncpa [#allocation8], 1
    %s1030 = scalar_lea.sflag [#allocation8], 1
    %1031 = vsyncpa %s1030, 1

</llo_original>
